<compile_context>
chip_gen: v5e
topology: v5e:2x2
jax: 0.10.0
libtpu: 0.0.40
codegen_flags: <defaults>
</compile_context>

<pallas_src>
import functools

import jax
import jax.numpy as jnp
from jax.experimental import pallas as pl
from jax.experimental.pallas import tpu as pltpu


def _round_up(x, m):
    return ((x + m - 1) // m) * m


@functools.lru_cache(maxsize=None)
def _vmem_limit_bytes():
    """Scoped-VMEM limit: 48 MiB is safe on every generation (v7x has 64 MiB
    per TensorCore); allow up to 96 MiB when the runtime reports the larger
    128 MiB physical VMEM (v5e / v6e)."""
    cap = 64 * 1024 * 1024                      # conservative (v7x per-core)
    try:
        cap = int(pltpu.get_tpu_info().vmem_capacity_bytes)
    except Exception:
        pass                                    # query unavailable -> v7x sizing
    return max(48 * 1024 * 1024, min(cap * 3 // 4, 96 * 1024 * 1024))


def _pick_block_batch(B, S, Ep, T, Fp, Op, fixed_bytes, vmem_limit):
    """Pick the batch block from a VMEM budget (not a fixed 8)."""
    budget = vmem_limit * 4 // 5 - fixed_bytes - (2 << 20)   # headroom
    per_bb = (2 * S * Ep * 2         # double-buffered bf16 input block
              + S * T * Fp * 4       # f32 product of the fused tap matmul
              + S * Fp * 4           # per-branch window-sum transient
              + 2 * Op * 4)          # double-buffered f32 output block
    bb = max(16, (budget // per_bb) // 16 * 16)
    bb = min(bb, 512, _round_up(B, 16))
    if B > 16:                       # keep >= 2 grid steps (v7x has 2 cores)
        bb = min(bb, _round_up((B + 1) // 2, 16))
    return max(bb, 16)


# ----------------------------- Pallas kernel --------------------------------
def _make_textcnn_kernel(filter_sizes, seq_len, fp):
    """Kernel body for a fixed tuple of filter sizes (time-major layout)."""

    def kernel(x_ref, w_all_ref, bcat_ref, wfc_ref, bfc_ref, out_ref):
        s, bb, ep = x_ref.shape                   # [S, bb, Ep] bf16
        tfp = w_all_ref.shape[1]                  # sum(fs) * Fp

        # Fused conv matmul: every tap of every branch in one MXU stream.
        x_flat = x_ref[...].reshape(s * bb, ep)   # layout-free merge (bb % 16 == 0)
        y = jnp.dot(x_flat, w_all_ref[...],
                    preferred_element_type=jnp.float32)       # [S*bb, T*Fp] f32
        y3 = y.reshape(s, bb, tfp)                              # time-major

        pooled_parts = []
        tap = 0
        for fs in filter_sizes:
            lv = seq_len - fs + 1                 # number of valid windows
            conv = None
            for t in range(fs):
                c0 = (tap + t) * fp               # 128-aligned lane offset
                piece = y3[t:t + lv, :, c0:c0 + fp]   # whole-slab + lane slice
                conv = piece if conv is None else conv + piece
            # max over time = reduction over the untiled leading axis (VPU only)
            pooled_parts.append(jnp.max(conv, axis=0))          # [bb, Fp]
            tap += fs

        # bias + ReLU after the max (exact reorder), once on the concat.
        pooled = jnp.concatenate(pooled_parts, axis=-1)         # [bb, nb*Fp]
        pooled = jnp.maximum(pooled + bcat_ref[...], 0.0)

        # Single f32 FC dot (no bf16 re-rounding of pooled).
        out = jnp.dot(pooled, wfc_ref[...],
                      preferred_element_type=jnp.float32)       # [bb, Op]
        out_ref[...] = out + bfc_ref[...]

    return kernel


# ------------------------------ parameters -----------------------------------
def init_params(key, vocab_size, embedding_dim, n_filters, filter_sizes,
                output_dim, pad_idx):
    keys = jax.random.split(key, 2 + 2 * len(filter_sizes) + 2)
    params = {}
    emb = 0.1 * jax.random.normal(keys[0], (vocab_size, embedding_dim),
                                  jnp.float32)
    emb = emb.at[pad_idx].set(0.0)                     # padding_idx row is zero
    params["embedding"] = emb

    params["convs"] = []
    for i, fs in enumerate(filter_sizes):
        w = 0.1 * jax.random.normal(keys[1 + 2 * i],
                                    (n_filters, 1, fs, embedding_dim),
                                    jnp.float32)
        b = 0.1 * jax.random.normal(keys[2 + 2 * i], (n_filters,), jnp.float32)
        params["convs"].append((w, b))

    params["fc_w"] = 0.1 * jax.random.normal(
        keys[-2], (output_dim, len(filter_sizes) * n_filters), jnp.float32)
    params["fc_b"] = 0.1 * jax.random.normal(keys[-1], (output_dim,),
                                             jnp.float32)
    return params


def prepare_params(params, filter_sizes):
    """One-time repack (outside the jitted hot path) into kernel-ready,
    lane-padded operands."""
    filter_sizes = tuple(filter_sizes)
    E = params["embedding"].shape[1]
    F = params["convs"][0][0].shape[0]
    O = params["fc_w"].shape[0]
    nb = len(filter_sizes)
    Ep, Fp, Op = _round_up(E, 128), _round_up(F, 128), _round_up(O, 128)

    # bf16 embedding table (lane-padded) -> gather emits the bf16 slab directly.
    emb = jnp.pad(params["embedding"], ((0, 0), (0, Ep - E))).astype(jnp.bfloat16)

    # All conv taps concatenated along N: [Ep, sum(fs)*Fp] bf16.
    taps, b_parts = [], []
    for (w, b), fs in zip(params["convs"], filter_sizes):
        for t in range(fs):
            wt = jnp.transpose(w[:, 0, t, :])                      # [E, F]
            taps.append(jnp.pad(wt, ((0, Ep - E), (0, Fp - F))))
        b_parts.append(jnp.pad(b, (0, Fp - F)))
    w_all = jnp.concatenate(taps, axis=1).astype(jnp.bfloat16)
    b_cat = jnp.concatenate(b_parts).reshape(1, nb * Fp).astype(jnp.float32)

    # FC weight split per branch, re-stacked on the padded feature axis (f32).
    wfc_t = params["fc_w"].T                                       # [nb*F, O]
    chunks = [jnp.pad(wfc_t[i * F:(i + 1) * F], ((0, Fp - F), (0, Op - O)))
              for i in range(nb)]
    wfc = jnp.concatenate(chunks, axis=0).astype(jnp.float32)      # [nb*Fp, Op]
    bfc = jnp.pad(params["fc_b"], (0, Op - O)).reshape(1, Op).astype(jnp.float32)

    return {"emb": emb, "w_all": w_all, "b_cat": b_cat, "wfc": wfc, "bfc": bfc}


# ------------------------------ JAX wrapper ----------------------------------
@functools.partial(jax.jit,
                   static_argnames=("filter_sizes", "output_dim", "block_batch"))
def textcnn_forward(text, kparams, filter_sizes, output_dim, block_batch=None):
    filter_sizes = tuple(filter_sizes)
    nb = len(filter_sizes)
    T = sum(filter_sizes)
    B, S = text.shape
    assert all(fs <= S for fs in filter_sizes), \
        "filter size larger than sequence length"

    Ep = kparams["emb"].shape[1]
    Fp = kparams["w_all"].shape[1] // T
    Op = kparams["wfc"].shape[1]

    # Time-major bf16 gather: [S, B, Ep] (no f32 slab, no HBM transpose pass).
    embedded = kparams["emb"][text.T]

    vmem_limit = _vmem_limit_bytes()
    fixed_bytes = 2 * (kparams["w_all"].size * 2 + kparams["b_cat"].size * 4
                       + kparams["wfc"].size * 4 + kparams["bfc"].size * 4)
    if block_batch is None:
        bb = _pick_block_batch(B, S, Ep, T, Fp, Op, fixed_bytes, vmem_limit)
    else:
        bb = max(16, _round_up(min(block_batch, _round_up(B, 16)), 16))
    B_pad = _round_up(B, bb)
    grid = (B_pad // bb,)

    x = jnp.pad(embedded, ((0, 0), (0, B_pad - B), (0, 0)))   # [S, B_pad, Ep]

    kernel = _make_textcnn_kernel(filter_sizes, S, Fp)

    in_specs = [
        pl.BlockSpec((S, bb, Ep), lambda i: (0, i, 0)),
        pl.BlockSpec(kparams["w_all"].shape, lambda i: (0, 0)),
        pl.BlockSpec(kparams["b_cat"].shape, lambda i: (0, 0)),
        pl.BlockSpec(kparams["wfc"].shape, lambda i: (0, 0)),
        pl.BlockSpec(kparams["bfc"].shape, lambda i: (0, 0)),
    ]
    out_specs = pl.BlockSpec((bb, Op), lambda i: (i, 0))

    flops = 2 * B_pad * S * Ep * T * Fp + 2 * B_pad * nb * Fp * Op
    bytes_accessed = (x.size * 2 + kparams["w_all"].size * 2
                      + kparams["b_cat"].size * 4 + kparams["wfc"].size * 4
                      + kparams["bfc"].size * 4 + B_pad * Op * 4)
    cost = pl.CostEstimate(flops=flops, transcendentals=0,
                           bytes_accessed=bytes_accessed)

    out = pl.pallas_call(
        kernel,
        out_shape=jax.ShapeDtypeStruct((B_pad, Op), jnp.float32),
        grid_spec=pltpu.PrefetchScalarGridSpec(
            num_scalar_prefetch=0,
            grid=grid,
            in_specs=in_specs,
            out_specs=out_specs,
        ),
        compiler_params=pltpu.CompilerParams(
            dimension_semantics=("parallel",),
            vmem_limit_bytes=vmem_limit,
        ),
        cost_estimate=cost,
    )(x, kparams["w_all"], kparams["b_cat"], kparams["wfc"], kparams["bfc"])

    return out[:B, :output_dim]


# ------------------------------ reference ------------------------------------
def textcnn_reference(text, params, filter_sizes):
    embedded = params["embedding"][text]                 # [B, S, E] f32
    B, S, E = embedded.shape
    pooled = []
    for (w, b), fs in zip(params["convs"], filter_sizes):
        L = S - fs + 1
        windows = jnp.stack([embedded[:, t:t + fs, :] for t in range(L)], axis=1)
        windows = windows.reshape(B, L, fs * E)
        wf = w.reshape(w.shape[0], fs * E)               # [F, fs*E]
        conv = jnp.einsum("bld,fd->blf", windows, wf) + b[None, None, :]
        act = jnp.maximum(conv, 0.0)
        pooled.append(jnp.max(act, axis=1))
    cat = jnp.concatenate(pooled, axis=-1)               # dropout == identity
    return cat @ params["fc_w"].T + params["fc_b"]


# -------------------------------- main ----------------------------------------
if __name__ == "__main__":
    vocab_size = 50
    embedding_dim = 32
    n_filters = 8
    filter_sizes = (3, 4, 5)
    output_dim = 4
    pad_idx = 0
    batch, seq = 2, 16

    key = jax.random.PRNGKey(0)
    k_text, k_params = jax.random.split(key)
    text = jax.random.randint(k_text, (batch, seq), 0, vocab_size, jnp.int32)

    params = init_params(k_params, vocab_size, embedding_dim, n_filters,
                         filter_sizes, output_dim, pad_idx)
    kparams = prepare_params(params, filter_sizes)   # once, outside the hot path

    out = textcnn_forward(text, kparams, filter_sizes=filter_sizes,
                          output_dim=output_dim)
    out = jax.block_until_ready(out)

    ref = textcnn_reference(text, params, filter_sizes)
    assert out.shape == (batch, output_dim), out.shape
    # bf16 matmul operands with f32 accumulation -> loosened tolerance.
    assert jnp.allclose(out, ref, atol=2e-2, rtol=2e-2), (out, ref)

    print("KERNEL_OK")
</pallas_src>

<mosaic_0001>
module attributes {stable_mosaic.version = 11 : i64} {
  func.func @kernel(%arg0: i32, %arg1: memref<16x16x128xbf16, #tpu.memory_space<vmem>>, %arg2: memref<128x1536xbf16, #tpu.memory_space<vmem>>, %arg3: memref<1x384xf32, #tpu.memory_space<vmem>>, %arg4: memref<384x128xf32, #tpu.memory_space<vmem>>, %arg5: memref<1x128xf32, #tpu.memory_space<vmem>>, %arg6: memref<16x128xf32, #tpu.memory_space<vmem>>) attributes {dimension_semantics = [#tpu.dimension_semantics<parallel>], iteration_bounds = array<i64: 1>, scalar_prefetch = 0 : i64, scratch_operands = 0 : i64, tpu.core_type = #tpu.core_type<tc>, window_params = [{transform_indices = @transform_0, window_bounds = array<i64: 16, 16, 128>}, {pipeline_mode = #tpu.pipeline_mode<synchronous>, transform_indices = @transform_1, window_bounds = array<i64: 128, 1536>}, {pipeline_mode = #tpu.pipeline_mode<synchronous>, transform_indices = @transform_2, window_bounds = array<i64: 1, 384>}, {pipeline_mode = #tpu.pipeline_mode<synchronous>, transform_indices = @transform_3, window_bounds = array<i64: 384, 128>}, {pipeline_mode = #tpu.pipeline_mode<synchronous>, transform_indices = @transform_4, window_bounds = array<i64: 1, 128>}, {transform_indices = @transform_5, window_bounds = array<i64: 16, 128>}]} {
    %c0 = arith.constant 0 : index
    %c0_0 = arith.constant 0 : index
    %c0_1 = arith.constant 0 : index
    %0 = vector.load %arg1[%c0, %c0_0, %c0_1] : memref<16x16x128xbf16, #tpu.memory_space<vmem>>, vector<16x16x128xbf16>
    %1 = vector.shape_cast %0 : vector<16x16x128xbf16> to vector<256x128xbf16>
    %c0_2 = arith.constant 0 : index
    %c0_3 = arith.constant 0 : index
    %2 = vector.load %arg2[%c0_2, %c0_3] : memref<128x1536xbf16, #tpu.memory_space<vmem>>, vector<128x1536xbf16>
    %cst = arith.constant dense<0.000000e+00> : vector<256x1536xf32>
    %3 = tpu.matmul %1, %2, %cst {dimension_numbers = #tpu.dot_dimension_numbers<[1], [0], [0], [1], [0, 0, 1, 1], [], []>} : vector<256x128xbf16>, vector<128x1536xbf16>, vector<256x1536xf32> -> vector<256x1536xf32>
    %4 = vector.shape_cast %3 : vector<256x1536xf32> to vector<16x16x1536xf32>
    %5 = vector.extract_strided_slice %4 {offsets = [0, 0, 0], sizes = [14, 16, 128], strides = [1, 1, 1]} : vector<16x16x1536xf32> to vector<14x16x128xf32>
    %6 = vector.extract_strided_slice %4 {offsets = [1, 0, 128], sizes = [14, 16, 128], strides = [1, 1, 1]} : vector<16x16x1536xf32> to vector<14x16x128xf32>
    %7 = arith.addf %5, %6 : vector<14x16x128xf32>
    %8 = vector.extract_strided_slice %4 {offsets = [2, 0, 256], sizes = [14, 16, 128], strides = [1, 1, 1]} : vector<16x16x1536xf32> to vector<14x16x128xf32>
    %9 = arith.addf %7, %8 : vector<14x16x128xf32>
    %cst_4 = arith.constant dense<0xFF800000> : vector<16x128xf32>
    %10 = vector.multi_reduction <maximumf>, %9, %cst_4 [0] : vector<14x16x128xf32> to vector<16x128xf32>
    %11 = vector.extract_strided_slice %4 {offsets = [0, 0, 384], sizes = [13, 16, 128], strides = [1, 1, 1]} : vector<16x16x1536xf32> to vector<13x16x128xf32>
    %12 = vector.extract_strided_slice %4 {offsets = [1, 0, 512], sizes = [13, 16, 128], strides = [1, 1, 1]} : vector<16x16x1536xf32> to vector<13x16x128xf32>
    %13 = arith.addf %11, %12 : vector<13x16x128xf32>
    %14 = vector.extract_strided_slice %4 {offsets = [2, 0, 640], sizes = [13, 16, 128], strides = [1, 1, 1]} : vector<16x16x1536xf32> to vector<13x16x128xf32>
    %15 = arith.addf %13, %14 : vector<13x16x128xf32>
    %16 = vector.extract_strided_slice %4 {offsets = [3, 0, 768], sizes = [13, 16, 128], strides = [1, 1, 1]} : vector<16x16x1536xf32> to vector<13x16x128xf32>
    %17 = arith.addf %15, %16 : vector<13x16x128xf32>
    %cst_5 = arith.constant dense<0xFF800000> : vector<16x128xf32>
    %18 = vector.multi_reduction <maximumf>, %17, %cst_5 [0] : vector<13x16x128xf32> to vector<16x128xf32>
    %19 = vector.extract_strided_slice %4 {offsets = [0, 0, 896], sizes = [12, 16, 128], strides = [1, 1, 1]} : vector<16x16x1536xf32> to vector<12x16x128xf32>
    %20 = vector.extract_strided_slice %4 {offsets = [1, 0, 1024], sizes = [12, 16, 128], strides = [1, 1, 1]} : vector<16x16x1536xf32> to vector<12x16x128xf32>
    %21 = arith.addf %19, %20 : vector<12x16x128xf32>
    %22 = vector.extract_strided_slice %4 {offsets = [2, 0, 1152], sizes = [12, 16, 128], strides = [1, 1, 1]} : vector<16x16x1536xf32> to vector<12x16x128xf32>
    %23 = arith.addf %21, %22 : vector<12x16x128xf32>
    %24 = vector.extract_strided_slice %4 {offsets = [3, 0, 1280], sizes = [12, 16, 128], strides = [1, 1, 1]} : vector<16x16x1536xf32> to vector<12x16x128xf32>
    %25 = arith.addf %23, %24 : vector<12x16x128xf32>
    %26 = vector.extract_strided_slice %4 {offsets = [4, 0, 1408], sizes = [12, 16, 128], strides = [1, 1, 1]} : vector<16x16x1536xf32> to vector<12x16x128xf32>
    %27 = arith.addf %25, %26 : vector<12x16x128xf32>
    %cst_6 = arith.constant dense<0xFF800000> : vector<16x128xf32>
    %28 = vector.multi_reduction <maximumf>, %27, %cst_6 [0] : vector<12x16x128xf32> to vector<16x128xf32>
    %29 = tpu.concatenate %10, %18, %28 in 1 : vector<16x128xf32>, vector<16x128xf32>, vector<16x128xf32> -> vector<16x384xf32>
    %c0_7 = arith.constant 0 : index
    %c0_8 = arith.constant 0 : index
    %30 = vector.load %arg3[%c0_7, %c0_8] : memref<1x384xf32, #tpu.memory_space<vmem>>, vector<1x384xf32>
    %31 = vector.broadcast %30 : vector<1x384xf32> to vector<16x384xf32>
    %32 = arith.addf %29, %31 : vector<16x384xf32>
    %cst_9 = arith.constant 0.000000e+00 : f32
    %33 = vector.broadcast %cst_9 : f32 to vector<16x384xf32>
    %34 = arith.maximumf %32, %33 : vector<16x384xf32>
    %c0_10 = arith.constant 0 : index
    %c0_11 = arith.constant 0 : index
    %35 = vector.load %arg4[%c0_10, %c0_11] : memref<384x128xf32, #tpu.memory_space<vmem>>, vector<384x128xf32>
    %cst_12 = arith.constant dense<0.000000e+00> : vector<16x128xf32>
    %36 = tpu.matmul %34, %35, %cst_12 {dimension_numbers = #tpu.dot_dimension_numbers<[1], [0], [0], [1], [0, 0, 1, 1], [], []>} : vector<16x384xf32>, vector<384x128xf32>, vector<16x128xf32> -> vector<16x128xf32>
    %c0_13 = arith.constant 0 : index
    %c0_14 = arith.constant 0 : index
    %37 = vector.load %arg5[%c0_13, %c0_14] : memref<1x128xf32, #tpu.memory_space<vmem>>, vector<1x128xf32>
    %38 = vector.broadcast %37 : vector<1x128xf32> to vector<16x128xf32>
    %39 = arith.addf %36, %38 : vector<16x128xf32>
    %c0_15 = arith.constant 0 : index
    %c0_16 = arith.constant 0 : index
    %40 = vector.load %arg6[%c0_15, %c0_16] : memref<16x128xf32, #tpu.memory_space<vmem>>, vector<16x128xf32>
    tpu.vector_store %arg6[%c0_15, %c0_16], %39 {strides = array<i32>} : memref<16x128xf32, #tpu.memory_space<vmem>>, vector<16x128xf32>,
    return
  }
  func.func @transform_0(%arg0: i32) -> (i32, i32, i32) {
    %c0_i32 = arith.constant 0 : i32
    %c0_i32_0 = arith.constant 0 : i32
    %c0_i32_1 = arith.constant 0 : i32
    return %c0_i32, %arg0, %c0_i32_0 : i32, i32, i32
  }
  func.func @transform_1(%arg0: i32) -> (i32, i32) {
    %c0_i32 = arith.constant 0 : i32
    %c0_i32_0 = arith.constant 0 : i32
    %c0_i32_1 = arith.constant 0 : i32
    return %c0_i32, %c0_i32_0 : i32, i32
  }
  func.func @transform_2(%arg0: i32) -> (i32, i32) {
    %c0_i32 = arith.constant 0 : i32
    %c0_i32_0 = arith.constant 0 : i32
    %c0_i32_1 = arith.constant 0 : i32
    return %c0_i32, %c0_i32_0 : i32, i32
  }
  func.func @transform_3(%arg0: i32) -> (i32, i32) {
    %c0_i32 = arith.constant 0 : i32
    %c0_i32_0 = arith.constant 0 : i32
    %c0_i32_1 = arith.constant 0 : i32
    return %c0_i32, %c0_i32_0 : i32, i32
  }
  func.func @transform_4(%arg0: i32) -> (i32, i32) {
    %c0_i32 = arith.constant 0 : i32
    %c0_i32_0 = arith.constant 0 : i32
    %c0_i32_1 = arith.constant 0 : i32
    return %c0_i32, %c0_i32_0 : i32, i32
  }
  func.func @transform_5(%arg0: i32) -> (i32, i32) {
    %c0_i32 = arith.constant 0 : i32
    %c0_i32_0 = arith.constant 0 : i32
    return %arg0, %c0_i32 : i32, i32
  }
}

</mosaic_0001>

<llo_original>
// kernel: textcnn_forward.1
$region0: #{textcnn_forward.1}
  #allocation0 [shape = 'u32[]', space=smem, size = 0x4, offset = 0x4, fixed_abs, tag = 'smem constant byte address 0x4 - core index']
  #allocation1 [shape = 'u32[72,128]{1,0:T(1,128)}', space=vmem, size = 0x9000, scoped, tag = 'internal scratch']
  %s0 = inlined_call_operand.vmem [shape: bf16[16,16,128], index: 0, kind: input, shape index: {}]
  %s1 = inlined_call_operand.hbm [shape: bf16[128,1536], index: 1, kind: input, shape index: {}]
  %s2 = inlined_call_operand.vmem [shape: f32[1,384], index: 2, kind: input, shape index: {}]
  %s3 = inlined_call_operand.hbm [shape: f32[384,128], index: 3, kind: input, shape index: {}]
  %s4 = inlined_call_operand.vmem [shape: f32[1,128], index: 4, kind: input, shape index: {}]
  %s5 = inlined_call_operand.vmem [shape: f32[16,128], index: 5, kind: output, shape index: {}]
  %s6 = sld [smem:[#allocation0]]
  $region38: #{textcnn_forward.1} parent=0
    _
  %s8 = ssub.s32 1, %s6
  %s9 = scalar_select 0, %s8, %s6
  $region1: #{textcnn_forward.1} parent=0
    #allocation2 [shape = 'u8[393216]{0}', space=vmem, size = 0x60000, scoped, tag = 'input window, operand 1, single buffered']
    #allocation3 [shape = 's32[1]{0}', space=sflag, size = 0x4, scoped, tag = 'scoped memory for textcnn_forward.1']
    #allocation4 [shape = 'u8[196608]{0}', space=vmem, size = 0x30000, scoped, tag = 'input window, operand 3, single buffered']
    #allocation5 [shape = 's32[1]{0}', space=sflag, size = 0x4, scoped, tag = 'scoped memory for textcnn_forward.1']
    %10 = vsyncpa [#allocation3], 0
    %11 = vsyncpa [#allocation5], 0
    // Predicated region
    $region2: #{textcnn_forward.1} parent=1 // pred_check
      _
    $region3: #{textcnn_forward.1} parent=1 // pred_check_branch
      %13 = sbr.rel (0) target = $region5
    $region4: #{textcnn_forward.1} parent=1 // pred_region
      _
    $region5: #{textcnn_forward.1} parent=1 // pred_fallthru
      _
    // Predicated region
    $region6: #{textcnn_forward.1} parent=1 // pred_check
      _
    $region7: #{textcnn_forward.1} parent=1 // pred_check_branch
      %15 = sbr.rel (0) target = $region9
    $region8: #{textcnn_forward.1} parent=1 // pred_region
      %17 = vsyncadd [#allocation3], 0
      %s18 = sshll.u32 %s1, 4
      %s19 = int_to_ptr.hbm [resolvable:$true] %s18
      %s20 = sshll.u32 [#allocation2], 4
      %s21 = int_to_ptr.vmem [resolvable:$true] %s20
      %26 = dma.hbm_to_vmem [thread:$0]  %s19, 12288, %s21, [#allocation3], 768, 768, 48
    $region9: #{textcnn_forward.1} parent=1 // pred_fallthru
      _
    // Predicated region
    $region10: #{textcnn_forward.1} parent=1 // pred_check
      _
    $region11: #{textcnn_forward.1} parent=1 // pred_check_branch
      %28 = sbr.rel (0) target = $region13
    $region12: #{textcnn_forward.1} parent=1 // pred_region
      _
    $region13: #{textcnn_forward.1} parent=1 // pred_fallthru
      _
    // Predicated region
    $region14: #{textcnn_forward.1} parent=1 // pred_check
      _
    $region15: #{textcnn_forward.1} parent=1 // pred_check_branch
      %30 = sbr.rel (0) target = $region17
    $region16: #{textcnn_forward.1} parent=1 // pred_region
      %32 = vsyncadd [#allocation5], 0
      %s33 = sshll.u32 %s3, 4
      %s34 = int_to_ptr.hbm [resolvable:$true] %s33
      %s35 = sshll.u32 [#allocation4], 4
      %s36 = int_to_ptr.vmem [resolvable:$true] %s35
      %41 = dma.hbm_to_vmem [thread:$0]  %s34, 6144, %s36, [#allocation5], 128, 128, 8
    $region17: #{textcnn_forward.1} parent=1 // pred_fallthru
      _
    // Predicated region
    $region18: #{textcnn_forward.1} parent=1 // pred_check
      _
    $region19: #{textcnn_forward.1} parent=1 // pred_check_branch
      %43 = sbr.rel (0) target = $region21
    $region20: #{textcnn_forward.1} parent=1 // pred_region
      _
    $region21: #{textcnn_forward.1} parent=1 // pred_fallthru
      _
    // Predicated region
    $region22: #{textcnn_forward.1} parent=1 // pred_check
      _
    $region23: #{textcnn_forward.1} parent=1 // pred_check_branch
      %45 = sbr.rel (0) target = $region25
    $region24: #{textcnn_forward.1} parent=1 // pred_region
      %47 = dma.done [#allocation3], 12288
    $region25: #{textcnn_forward.1} parent=1 // pred_fallthru
      _
    // Predicated region
    $region26: #{textcnn_forward.1} parent=1 // pred_check
      _
    $region27: #{textcnn_forward.1} parent=1 // pred_check_branch
      %49 = sbr.rel (0) target = $region29
    $region28: #{textcnn_forward.1} parent=1 // pred_region
      %51 = dma.done [#allocation5], 6144
    $region29: #{textcnn_forward.1} parent=1 // pred_fallthru
      _
    %v52 = vld [vmem:[%s0] sm:$0xf]
    %v53 = vld [vmem:[%s0 + $0x4] sm:$0xf]
    %v54 = vld [vmem:[%s0 + $0x8] sm:$0xf]
    %v55 = vld [vmem:[%s0 + $0xc] sm:$0xf]
    %v56 = vld [vmem:[%s0 + $0x10] sm:$0xf]
    %v57 = vld [vmem:[%s0 + $0x14] sm:$0xf]
    %v58 = vld [vmem:[%s0 + $0x18] sm:$0xf]
    %v59 = vld [vmem:[%s0 + $0x1c] sm:$0xf]
    %v60 = vld [vmem:[%s0 + $0x20] sm:$0xf]
    %v61 = vld [vmem:[%s0 + $0x24] sm:$0xf]
    %v62 = vld [vmem:[%s0 + $0x28] sm:$0xf]
    %v63 = vld [vmem:[%s0 + $0x2c] sm:$0xf]
    %v64 = vld [vmem:[%s0 + $0x30] sm:$0xf]
    %v65 = vld [vmem:[%s0 + $0x34] sm:$0xf]
    %v66 = vld [vmem:[%s0 + $0x38] sm:$0xf]
    %v67 = vld [vmem:[%s0 + $0x3c] sm:$0xf]
    %v68 = vld [vmem:[%s0 + $0x40] sm:$0xf]
    %v69 = vld [vmem:[%s0 + $0x44] sm:$0xf]
    %v70 = vld [vmem:[%s0 + $0x48] sm:$0xf]
    %v71 = vld [vmem:[%s0 + $0x4c] sm:$0xf]
    %v72 = vld [vmem:[%s0 + $0x50] sm:$0xf]
    %v73 = vld [vmem:[%s0 + $0x54] sm:$0xf]
    %v74 = vld [vmem:[%s0 + $0x58] sm:$0xf]
    %v75 = vld [vmem:[%s0 + $0x5c] sm:$0xf]
    %v76 = vld [vmem:[%s0 + $0x60] sm:$0xf]
    %v77 = vld [vmem:[%s0 + $0x64] sm:$0xf]
    %v78 = vld [vmem:[%s0 + $0x68] sm:$0xf]
    %v79 = vld [vmem:[%s0 + $0x6c] sm:$0xf]
    %v80 = vld [vmem:[%s0 + $0x70] sm:$0xf]
    %v81 = vld [vmem:[%s0 + $0x74] sm:$0xf]
    %v82 = vld [vmem:[%s0 + $0x78] sm:$0xf]
    %v83 = vld [vmem:[%s0 + $0x7c] sm:$0xf]
    %v84 = vld [vmem:[#allocation2] sm:$0xff]
    %v85 = vld [vmem:[#allocation2 + $0x8] sm:$0xff]
    %v86 = vld [vmem:[#allocation2 + $0x10] sm:$0xff]
    %v87 = vld [vmem:[#allocation2 + $0x18] sm:$0xff]
    %v88 = vld [vmem:[#allocation2 + $0x20] sm:$0xff]
    %v89 = vld [vmem:[#allocation2 + $0x28] sm:$0xff]
    %v90 = vld [vmem:[#allocation2 + $0x30] sm:$0xff]
    %v91 = vld [vmem:[#allocation2 + $0x38] sm:$0xff]
    %v92 = vld [vmem:[#allocation2 + $0x40] sm:$0xff]
    %v93 = vld [vmem:[#allocation2 + $0x48] sm:$0xff]
    %v94 = vld [vmem:[#allocation2 + $0x50] sm:$0xff]
    %v95 = vld [vmem:[#allocation2 + $0x58] sm:$0xff]
    %v96 = vld [vmem:[#allocation2 + $0x60] sm:$0xff]
    %v97 = vld [vmem:[#allocation2 + $0x68] sm:$0xff]
    %v98 = vld [vmem:[#allocation2 + $0x70] sm:$0xff]
    %v99 = vld [vmem:[#allocation2 + $0x78] sm:$0xff]
    %v100 = vld [vmem:[#allocation2 + $0x80] sm:$0xff]
    %v101 = vld [vmem:[#allocation2 + $0x88] sm:$0xff]
    %v102 = vld [vmem:[#allocation2 + $0x90] sm:$0xff]
    %v103 = vld [vmem:[#allocation2 + $0x98] sm:$0xff]
    %v104 = vld [vmem:[#allocation2 + $0xa0] sm:$0xff]
    %v105 = vld [vmem:[#allocation2 + $0xa8] sm:$0xff]
    %v106 = vld [vmem:[#allocation2 + $0xb0] sm:$0xff]
    %v107 = vld [vmem:[#allocation2 + $0xb8] sm:$0xff]
    %v108 = vld [vmem:[#allocation2 + $0xc0] sm:$0xff]
    %v109 = vld [vmem:[#allocation2 + $0xc8] sm:$0xff]
    %v110 = vld [vmem:[#allocation2 + $0xd0] sm:$0xff]
    %v111 = vld [vmem:[#allocation2 + $0xd8] sm:$0xff]
    %v112 = vld [vmem:[#allocation2 + $0xe0] sm:$0xff]
    %v113 = vld [vmem:[#allocation2 + $0xe8] sm:$0xff]
    %v114 = vld [vmem:[#allocation2 + $0xf0] sm:$0xff]
    %v115 = vld [vmem:[#allocation2 + $0xf8] sm:$0xff]
    %v116 = vld [vmem:[#allocation2 + $0x100] sm:$0xff]
    %v117 = vld [vmem:[#allocation2 + $0x108] sm:$0xff]
    %v118 = vld [vmem:[#allocation2 + $0x110] sm:$0xff]
    %v119 = vld [vmem:[#allocation2 + $0x118] sm:$0xff]
    %v120 = vld [vmem:[#allocation2 + $0x120] sm:$0xff]
    %v121 = vld [vmem:[#allocation2 + $0x128] sm:$0xff]
    %v122 = vld [vmem:[#allocation2 + $0x130] sm:$0xff]
    %v123 = vld [vmem:[#allocation2 + $0x138] sm:$0xff]
    %v124 = vld [vmem:[#allocation2 + $0x140] sm:$0xff]
    %v125 = vld [vmem:[#allocation2 + $0x148] sm:$0xff]
    %v126 = vld [vmem:[#allocation2 + $0x150] sm:$0xff]
    %v127 = vld [vmem:[#allocation2 + $0x158] sm:$0xff]
    %v128 = vld [vmem:[#allocation2 + $0x160] sm:$0xff]
    %v129 = vld [vmem:[#allocation2 + $0x168] sm:$0xff]
    %v130 = vld [vmem:[#allocation2 + $0x170] sm:$0xff]
    %v131 = vld [vmem:[#allocation2 + $0x178] sm:$0xff]
    %v132 = vld [vmem:[#allocation2 + $0x180] sm:$0xff]
    %v133 = vld [vmem:[#allocation2 + $0x188] sm:$0xff]
    %v134 = vld [vmem:[#allocation2 + $0x190] sm:$0xff]
    %v135 = vld [vmem:[#allocation2 + $0x198] sm:$0xff]
    %v136 = vld [vmem:[#allocation2 + $0x1a0] sm:$0xff]
    %v137 = vld [vmem:[#allocation2 + $0x1a8] sm:$0xff]
    %v138 = vld [vmem:[#allocation2 + $0x1b0] sm:$0xff]
    %v139 = vld [vmem:[#allocation2 + $0x1b8] sm:$0xff]
    %v140 = vld [vmem:[#allocation2 + $0x1c0] sm:$0xff]
    %v141 = vld [vmem:[#allocation2 + $0x1c8] sm:$0xff]
    %v142 = vld [vmem:[#allocation2 + $0x1d0] sm:$0xff]
    %v143 = vld [vmem:[#allocation2 + $0x1d8] sm:$0xff]
    %v144 = vld [vmem:[#allocation2 + $0x1e0] sm:$0xff]
    %v145 = vld [vmem:[#allocation2 + $0x1e8] sm:$0xff]
    %v146 = vld [vmem:[#allocation2 + $0x1f0] sm:$0xff]
    %v147 = vld [vmem:[#allocation2 + $0x1f8] sm:$0xff]
    %v148 = vld [vmem:[#allocation2 + $0x200] sm:$0xff]
    %v149 = vld [vmem:[#allocation2 + $0x208] sm:$0xff]
    %v150 = vld [vmem:[#allocation2 + $0x210] sm:$0xff]
    %v151 = vld [vmem:[#allocation2 + $0x218] sm:$0xff]
    %v152 = vld [vmem:[#allocation2 + $0x220] sm:$0xff]
    %v153 = vld [vmem:[#allocation2 + $0x228] sm:$0xff]
    %v154 = vld [vmem:[#allocation2 + $0x230] sm:$0xff]
    %v155 = vld [vmem:[#allocation2 + $0x238] sm:$0xff]
    %v156 = vld [vmem:[#allocation2 + $0x240] sm:$0xff]
    %v157 = vld [vmem:[#allocation2 + $0x248] sm:$0xff]
    %v158 = vld [vmem:[#allocation2 + $0x250] sm:$0xff]
    %v159 = vld [vmem:[#allocation2 + $0x258] sm:$0xff]
    %v160 = vld [vmem:[#allocation2 + $0x260] sm:$0xff]
    %v161 = vld [vmem:[#allocation2 + $0x268] sm:$0xff]
    %v162 = vld [vmem:[#allocation2 + $0x270] sm:$0xff]
    %v163 = vld [vmem:[#allocation2 + $0x278] sm:$0xff]
    %v164 = vld [vmem:[#allocation2 + $0x280] sm:$0xff]
    %v165 = vld [vmem:[#allocation2 + $0x288] sm:$0xff]
    %v166 = vld [vmem:[#allocation2 + $0x290] sm:$0xff]
    %v167 = vld [vmem:[#allocation2 + $0x298] sm:$0xff]
    %v168 = vld [vmem:[#allocation2 + $0x2a0] sm:$0xff]
    %v169 = vld [vmem:[#allocation2 + $0x2a8] sm:$0xff]
    %v170 = vld [vmem:[#allocation2 + $0x2b0] sm:$0xff]
    %v171 = vld [vmem:[#allocation2 + $0x2b8] sm:$0xff]
    %v172 = vld [vmem:[#allocation2 + $0x2c0] sm:$0xff]
    %v173 = vld [vmem:[#allocation2 + $0x2c8] sm:$0xff]
    %v174 = vld [vmem:[#allocation2 + $0x2d0] sm:$0xff]
    %v175 = vld [vmem:[#allocation2 + $0x2d8] sm:$0xff]
    %v176 = vld [vmem:[#allocation2 + $0x2e0] sm:$0xff]
    %v177 = vld [vmem:[#allocation2 + $0x2e8] sm:$0xff]
    %v178 = vld [vmem:[#allocation2 + $0x2f0] sm:$0xff]
    %v179 = vld [vmem:[#allocation2 + $0x2f8] sm:$0xff]
    %v212 = vunpack.c.l.b16 %v52
    %v213 = vunpack.c.l.b16 %v53
    %v214 = vunpack.c.l.b16 %v54
    %v215 = vunpack.c.l.b16 %v55
    %v216 = vunpack.c.l.b16 %v56
    %v217 = vunpack.c.l.b16 %v57
    %v218 = vunpack.c.l.b16 %v58
    %v219 = vunpack.c.l.b16 %v59
    %v220 = vunpack.c.l.b16 %v60
    %v221 = vunpack.c.l.b16 %v61
    %v222 = vunpack.c.l.b16 %v62
    %v223 = vunpack.c.l.b16 %v63
    %v224 = vunpack.c.l.b16 %v64
    %v225 = vunpack.c.l.b16 %v65
    %v226 = vunpack.c.l.b16 %v66
    %v227 = vunpack.c.l.b16 %v67
    %v228 = vunpack.c.l.b16 %v68
    %v229 = vunpack.c.l.b16 %v69
    %v230 = vunpack.c.l.b16 %v70
    %v231 = vunpack.c.l.b16 %v71
    %v232 = vunpack.c.l.b16 %v72
    %v233 = vunpack.c.l.b16 %v73
    %v234 = vunpack.c.l.b16 %v74
    %v235 = vunpack.c.l.b16 %v75
    %v236 = vunpack.c.l.b16 %v76
    %v237 = vunpack.c.l.b16 %v77
    %v238 = vunpack.c.l.b16 %v78
    %v239 = vunpack.c.l.b16 %v79
    %v240 = vunpack.c.l.b16 %v80
    %v241 = vunpack.c.l.b16 %v81
    %v242 = vunpack.c.l.b16 %v82
    %v243 = vunpack.c.l.b16 %v83
    %v244 = vpack.c.b16 %v213, %v212
    %v245 = vpack.c.b16 %v215, %v214
    %v246 = vpack.c.b16 %v217, %v216
    %v247 = vpack.c.b16 %v219, %v218
    %v248 = vpack.c.b16 %v221, %v220
    %v249 = vpack.c.b16 %v223, %v222
    %v250 = vpack.c.b16 %v225, %v224
    %v251 = vpack.c.b16 %v227, %v226
    %v252 = vpack.c.b16 %v229, %v228
    %v253 = vpack.c.b16 %v231, %v230
    %v254 = vpack.c.b16 %v233, %v232
    %v255 = vpack.c.b16 %v235, %v234
    %v256 = vpack.c.b16 %v237, %v236
    %v257 = vpack.c.b16 %v239, %v238
    %v258 = vpack.c.b16 %v241, %v240
    %v259 = vpack.c.b16 %v243, %v242
    %v372 = vunpack.c.l.b16 %v84
    %v373 = vunpack.c.h.b16 %v84
    %v374 = vunpack.c.l.b16 %v85
    %v375 = vunpack.c.h.b16 %v85
    %v376 = vunpack.c.l.b16 %v86
    %v377 = vunpack.c.h.b16 %v86
    %v378 = vunpack.c.l.b16 %v87
    %v379 = vunpack.c.h.b16 %v87
    %v380 = vunpack.c.l.b16 %v88
    %v381 = vunpack.c.h.b16 %v88
    %v382 = vunpack.c.l.b16 %v89
    %v383 = vunpack.c.h.b16 %v89
    %v384 = vunpack.c.l.b16 %v90
    %v385 = vunpack.c.h.b16 %v90
    %v386 = vunpack.c.l.b16 %v91
    %v387 = vunpack.c.h.b16 %v91
    %v388 = vunpack.c.l.b16 %v92
    %v389 = vunpack.c.h.b16 %v92
    %v390 = vunpack.c.l.b16 %v93
    %v391 = vunpack.c.h.b16 %v93
    %v392 = vunpack.c.l.b16 %v94
    %v393 = vunpack.c.h.b16 %v94
    %v394 = vunpack.c.l.b16 %v95
    %v395 = vunpack.c.h.b16 %v95
    %v396 = vunpack.c.l.b16 %v96
    %v397 = vunpack.c.h.b16 %v96
    %v398 = vunpack.c.l.b16 %v97
    %v399 = vunpack.c.h.b16 %v97
    %v400 = vunpack.c.l.b16 %v98
    %v401 = vunpack.c.h.b16 %v98
    %v402 = vunpack.c.l.b16 %v99
    %v403 = vunpack.c.h.b16 %v99
    %v404 = vunpack.c.l.b16 %v100
    %v405 = vunpack.c.h.b16 %v100
    %v406 = vunpack.c.l.b16 %v101
    %v407 = vunpack.c.h.b16 %v101
    %v408 = vunpack.c.l.b16 %v102
    %v409 = vunpack.c.h.b16 %v102
    %v410 = vunpack.c.l.b16 %v103
    %v411 = vunpack.c.h.b16 %v103
    %v412 = vunpack.c.l.b16 %v104
    %v413 = vunpack.c.h.b16 %v104
    %v414 = vunpack.c.l.b16 %v105
    %v415 = vunpack.c.h.b16 %v105
    %v416 = vunpack.c.l.b16 %v106
    %v417 = vunpack.c.h.b16 %v106
    %v418 = vunpack.c.l.b16 %v107
    %v419 = vunpack.c.h.b16 %v107
    %v420 = vunpack.c.l.b16 %v108
    %v421 = vunpack.c.h.b16 %v108
    %v422 = vunpack.c.l.b16 %v109
    %v423 = vunpack.c.h.b16 %v109
    %v424 = vunpack.c.l.b16 %v110
    %v425 = vunpack.c.h.b16 %v110
    %v426 = vunpack.c.l.b16 %v111
    %v427 = vunpack.c.h.b16 %v111
    %v428 = vunpack.c.l.b16 %v112
    %v429 = vunpack.c.h.b16 %v112
    %v430 = vunpack.c.l.b16 %v113
    %v431 = vunpack.c.h.b16 %v113
    %v432 = vunpack.c.l.b16 %v114
    %v433 = vunpack.c.h.b16 %v114
    %v434 = vunpack.c.l.b16 %v115
    %v435 = vunpack.c.h.b16 %v115
    %v436 = vunpack.c.l.b16 %v116
    %v437 = vunpack.c.h.b16 %v116
    %v438 = vunpack.c.l.b16 %v117
    %v439 = vunpack.c.h.b16 %v117
    %v440 = vunpack.c.l.b16 %v118
    %v441 = vunpack.c.h.b16 %v118
    %v442 = vunpack.c.l.b16 %v119
    %v443 = vunpack.c.h.b16 %v119
    %v444 = vunpack.c.l.b16 %v120
    %v445 = vunpack.c.h.b16 %v120
    %v446 = vunpack.c.l.b16 %v121
    %v447 = vunpack.c.h.b16 %v121
    %v448 = vunpack.c.l.b16 %v122
    %v449 = vunpack.c.h.b16 %v122
    %v450 = vunpack.c.l.b16 %v123
    %v451 = vunpack.c.h.b16 %v123
    %v452 = vunpack.c.l.b16 %v124
    %v453 = vunpack.c.h.b16 %v124
    %v454 = vunpack.c.l.b16 %v125
    %v455 = vunpack.c.h.b16 %v125
    %v456 = vunpack.c.l.b16 %v126
    %v457 = vunpack.c.h.b16 %v126
    %v458 = vunpack.c.l.b16 %v127
    %v459 = vunpack.c.h.b16 %v127
    %v460 = vunpack.c.l.b16 %v128
    %v461 = vunpack.c.h.b16 %v128
    %v462 = vunpack.c.l.b16 %v129
    %v463 = vunpack.c.h.b16 %v129
    %v464 = vunpack.c.l.b16 %v130
    %v465 = vunpack.c.h.b16 %v130
    %v466 = vunpack.c.l.b16 %v131
    %v467 = vunpack.c.h.b16 %v131
    %v468 = vunpack.c.l.b16 %v132
    %v469 = vunpack.c.h.b16 %v132
    %v470 = vunpack.c.l.b16 %v133
    %v471 = vunpack.c.h.b16 %v133
    %v472 = vunpack.c.l.b16 %v134
    %v473 = vunpack.c.h.b16 %v134
    %v474 = vunpack.c.l.b16 %v135
    %v475 = vunpack.c.h.b16 %v135
    %v476 = vunpack.c.l.b16 %v136
    %v477 = vunpack.c.h.b16 %v136
    %v478 = vunpack.c.l.b16 %v137
    %v479 = vunpack.c.h.b16 %v137
    %v480 = vunpack.c.l.b16 %v138
    %v481 = vunpack.c.h.b16 %v138
    %v482 = vunpack.c.l.b16 %v139
    %v483 = vunpack.c.h.b16 %v139
    %v484 = vunpack.c.l.b16 %v140
    %v485 = vunpack.c.h.b16 %v140
    %v486 = vunpack.c.l.b16 %v141
    %v487 = vunpack.c.h.b16 %v141
    %v488 = vunpack.c.l.b16 %v142
    %v489 = vunpack.c.h.b16 %v142
    %v490 = vunpack.c.l.b16 %v143
    %v491 = vunpack.c.h.b16 %v143
    %v492 = vunpack.c.l.b16 %v144
    %v493 = vunpack.c.h.b16 %v144
    %v494 = vunpack.c.l.b16 %v145
    %v495 = vunpack.c.h.b16 %v145
    %v496 = vunpack.c.l.b16 %v146
    %v497 = vunpack.c.h.b16 %v146
    %v498 = vunpack.c.l.b16 %v147
    %v499 = vunpack.c.h.b16 %v147
    %v500 = vunpack.c.l.b16 %v148
    %v501 = vunpack.c.h.b16 %v148
    %v502 = vunpack.c.l.b16 %v149
    %v503 = vunpack.c.h.b16 %v149
    %v504 = vunpack.c.l.b16 %v150
    %v505 = vunpack.c.h.b16 %v150
    %v506 = vunpack.c.l.b16 %v151
    %v507 = vunpack.c.h.b16 %v151
    %v508 = vunpack.c.l.b16 %v152
    %v509 = vunpack.c.h.b16 %v152
    %v510 = vunpack.c.l.b16 %v153
    %v511 = vunpack.c.h.b16 %v153
    %v512 = vunpack.c.l.b16 %v154
    %v513 = vunpack.c.h.b16 %v154
    %v514 = vunpack.c.l.b16 %v155
    %v515 = vunpack.c.h.b16 %v155
    %v516 = vunpack.c.l.b16 %v156
    %v517 = vunpack.c.h.b16 %v156
    %v518 = vunpack.c.l.b16 %v157
    %v519 = vunpack.c.h.b16 %v157
    %v520 = vunpack.c.l.b16 %v158
    %v521 = vunpack.c.h.b16 %v158
    %v522 = vunpack.c.l.b16 %v159
    %v523 = vunpack.c.h.b16 %v159
    %v524 = vunpack.c.l.b16 %v160
    %v525 = vunpack.c.h.b16 %v160
    %v526 = vunpack.c.l.b16 %v161
    %v527 = vunpack.c.h.b16 %v161
    %v528 = vunpack.c.l.b16 %v162
    %v529 = vunpack.c.h.b16 %v162
    %v530 = vunpack.c.l.b16 %v163
    %v531 = vunpack.c.h.b16 %v163
    %v532 = vunpack.c.l.b16 %v164
    %v533 = vunpack.c.h.b16 %v164
    %v534 = vunpack.c.l.b16 %v165
    %v535 = vunpack.c.h.b16 %v165
    %v536 = vunpack.c.l.b16 %v166
    %v537 = vunpack.c.h.b16 %v166
    %v538 = vunpack.c.l.b16 %v167
    %v539 = vunpack.c.h.b16 %v167
    %v540 = vunpack.c.l.b16 %v168
    %v541 = vunpack.c.h.b16 %v168
    %v542 = vunpack.c.l.b16 %v169
    %v543 = vunpack.c.h.b16 %v169
    %v544 = vunpack.c.l.b16 %v170
    %v545 = vunpack.c.h.b16 %v170
    %v546 = vunpack.c.l.b16 %v171
    %v547 = vunpack.c.h.b16 %v171
    %v548 = vunpack.c.l.b16 %v172
    %v549 = vunpack.c.h.b16 %v172
    %v550 = vunpack.c.l.b16 %v173
    %v551 = vunpack.c.h.b16 %v173
    %v552 = vunpack.c.l.b16 %v174
    %v553 = vunpack.c.h.b16 %v174
    %v554 = vunpack.c.l.b16 %v175
    %v555 = vunpack.c.h.b16 %v175
    %v556 = vunpack.c.l.b16 %v176
    %v557 = vunpack.c.h.b16 %v176
    %v558 = vunpack.c.l.b16 %v177
    %v559 = vunpack.c.h.b16 %v177
    %v560 = vunpack.c.l.b16 %v178
    %v561 = vunpack.c.h.b16 %v178
    %v562 = vunpack.c.l.b16 %v179
    %v563 = vunpack.c.h.b16 %v179
    %v564 = vpack.c.b16 %v384, %v372
    %v565 = vpack.c.b16 %v385, %v373
    %v566 = vpack.c.b16 %v386, %v374
    %v567 = vpack.c.b16 %v387, %v375
    %v568 = vpack.c.b16 %v388, %v376
    %v569 = vpack.c.b16 %v389, %v377
    %v570 = vpack.c.b16 %v390, %v378
    %v571 = vpack.c.b16 %v391, %v379
    %v572 = vpack.c.b16 %v392, %v380
    %v573 = vpack.c.b16 %v393, %v381
    %v574 = vpack.c.b16 %v394, %v382
    %v575 = vpack.c.b16 %v395, %v383
    %v576 = vpack.c.b16 %v408, %v396
    %v577 = vpack.c.b16 %v409, %v397
    %v578 = vpack.c.b16 %v410, %v398
    %v579 = vpack.c.b16 %v411, %v399
    %v580 = vpack.c.b16 %v412, %v400
    %v581 = vpack.c.b16 %v413, %v401
    %v582 = vpack.c.b16 %v414, %v402
    %v583 = vpack.c.b16 %v415, %v403
    %v584 = vpack.c.b16 %v416, %v404
    %v585 = vpack.c.b16 %v417, %v405
    %v586 = vpack.c.b16 %v418, %v406
    %v587 = vpack.c.b16 %v419, %v407
    %v588 = vpack.c.b16 %v432, %v420
    %v589 = vpack.c.b16 %v433, %v421
    %v590 = vpack.c.b16 %v434, %v422
    %v591 = vpack.c.b16 %v435, %v423
    %v592 = vpack.c.b16 %v436, %v424
    %v593 = vpack.c.b16 %v437, %v425
    %v594 = vpack.c.b16 %v438, %v426
    %v595 = vpack.c.b16 %v439, %v427
    %v596 = vpack.c.b16 %v440, %v428
    %v597 = vpack.c.b16 %v441, %v429
    %v598 = vpack.c.b16 %v442, %v430
    %v599 = vpack.c.b16 %v443, %v431
    %v600 = vpack.c.b16 %v456, %v444
    %v601 = vpack.c.b16 %v457, %v445
    %v602 = vpack.c.b16 %v458, %v446
    %v603 = vpack.c.b16 %v459, %v447
    %v604 = vpack.c.b16 %v460, %v448
    %v605 = vpack.c.b16 %v461, %v449
    %v606 = vpack.c.b16 %v462, %v450
    %v607 = vpack.c.b16 %v463, %v451
    %v608 = vpack.c.b16 %v464, %v452
    %v609 = vpack.c.b16 %v465, %v453
    %v610 = vpack.c.b16 %v466, %v454
    %v611 = vpack.c.b16 %v467, %v455
    %v612 = vpack.c.b16 %v480, %v468
    %v613 = vpack.c.b16 %v481, %v469
    %v614 = vpack.c.b16 %v482, %v470
    %v615 = vpack.c.b16 %v483, %v471
    %v616 = vpack.c.b16 %v484, %v472
    %v617 = vpack.c.b16 %v485, %v473
    %v618 = vpack.c.b16 %v486, %v474
    %v619 = vpack.c.b16 %v487, %v475
    %v620 = vpack.c.b16 %v488, %v476
    %v621 = vpack.c.b16 %v489, %v477
    %v622 = vpack.c.b16 %v490, %v478
    %v623 = vpack.c.b16 %v491, %v479
    %v624 = vpack.c.b16 %v504, %v492
    %v625 = vpack.c.b16 %v505, %v493
    %v626 = vpack.c.b16 %v506, %v494
    %v627 = vpack.c.b16 %v507, %v495
    %v628 = vpack.c.b16 %v508, %v496
    %v629 = vpack.c.b16 %v509, %v497
    %v630 = vpack.c.b16 %v510, %v498
    %v631 = vpack.c.b16 %v511, %v499
    %v632 = vpack.c.b16 %v512, %v500
    %v633 = vpack.c.b16 %v513, %v501
    %v634 = vpack.c.b16 %v514, %v502
    %v635 = vpack.c.b16 %v515, %v503
    %v636 = vpack.c.b16 %v528, %v516
    %v637 = vpack.c.b16 %v529, %v517
    %v638 = vpack.c.b16 %v530, %v518
    %v639 = vpack.c.b16 %v531, %v519
    %v640 = vpack.c.b16 %v532, %v520
    %v641 = vpack.c.b16 %v533, %v521
    %v642 = vpack.c.b16 %v534, %v522
    %v643 = vpack.c.b16 %v535, %v523
    %v644 = vpack.c.b16 %v536, %v524
    %v645 = vpack.c.b16 %v537, %v525
    %v646 = vpack.c.b16 %v538, %v526
    %v647 = vpack.c.b16 %v539, %v527
    %v648 = vpack.c.b16 %v552, %v540
    %v649 = vpack.c.b16 %v553, %v541
    %v650 = vpack.c.b16 %v554, %v542
    %v651 = vpack.c.b16 %v555, %v543
    %v652 = vpack.c.b16 %v556, %v544
    %v653 = vpack.c.b16 %v557, %v545
    %v654 = vpack.c.b16 %v558, %v546
    %v655 = vpack.c.b16 %v559, %v547
    %v656 = vpack.c.b16 %v560, %v548
    %v657 = vpack.c.b16 %v561, %v549
    %v658 = vpack.c.b16 %v562, %v550
    %v659 = vpack.c.b16 %v563, %v551
    %756 = vmatpush.bf16.msra.mxu0 %v648
    %757 = vmatpush.bf16.msra.mxu0 %v636
    %758 = vmatpush.bf16.msra.mxu0 %v624
    %759 = vmatpush.bf16.msra.mxu0 %v612
    %760 = vmatpush.bf16.msra.mxu0 %v600
    %761 = vmatpush.bf16.msra.mxu0 %v588
    %762 = vmatpush.bf16.msra.mxu0 %v576
    %763 = vmatpush.bf16.msra.mxu0 %v564
    %764 = vmatmul.bf16.gmra.mxu0 %v244
    %v765 = vpop.f32.mrf.mxu0
    %v766 = vadd.f32 0.0, %v765
    %v767 = vpop.f32.mrf.mxu0
    %v768 = vadd.f32 0.0, %v767
    %769 = vmatmul.bf16.gmra.mxu0 %v245
    %v770 = vpop.f32.mrf.mxu0
    %v771 = vadd.f32 0.0, %v770
    %v772 = vpop.f32.mrf.mxu0
    %v773 = vadd.f32 0.0, %v772
    %774 = vmatmul.bf16.gmra.mxu0 %v246
    %v775 = vpop.f32.mrf.mxu0
    %v776 = vadd.f32 0.0, %v775
    %v777 = vpop.f32.mrf.mxu0
    %v778 = vadd.f32 0.0, %v777
    %779 = vmatmul.bf16.gmra.mxu0 %v247
    %v780 = vpop.f32.mrf.mxu0
    %v781 = vadd.f32 0.0, %v780
    %v782 = vpop.f32.mrf.mxu0
    %v783 = vadd.f32 0.0, %v782
    %784 = vmatmul.bf16.gmra.mxu0 %v248
    %v785 = vpop.f32.mrf.mxu0
    %v786 = vadd.f32 0.0, %v785
    %v787 = vpop.f32.mrf.mxu0
    %v788 = vadd.f32 0.0, %v787
    %789 = vmatmul.bf16.gmra.mxu0 %v249
    %v790 = vpop.f32.mrf.mxu0
    %v791 = vadd.f32 0.0, %v790
    %v792 = vpop.f32.mrf.mxu0
    %v793 = vadd.f32 0.0, %v792
    %794 = vmatmul.bf16.gmra.mxu0 %v250
    %v795 = vpop.f32.mrf.mxu0
    %v796 = vadd.f32 0.0, %v795
    %v797 = vpop.f32.mrf.mxu0
    %v798 = vadd.f32 0.0, %v797
    %799 = vmatmul.bf16.gmra.mxu0 %v251
    %v800 = vpop.f32.mrf.mxu0
    %v801 = vadd.f32 0.0, %v800
    %v802 = vpop.f32.mrf.mxu0
    %v803 = vadd.f32 0.0, %v802
    %804 = vmatmul.bf16.gmra.mxu0 %v252
    %v805 = vpop.f32.mrf.mxu0
    %v806 = vadd.f32 0.0, %v805
    %v807 = vpop.f32.mrf.mxu0
    %v808 = vadd.f32 0.0, %v807
    %809 = vmatmul.bf16.gmra.mxu0 %v253
    %v810 = vpop.f32.mrf.mxu0
    %v811 = vadd.f32 0.0, %v810
    %v812 = vpop.f32.mrf.mxu0
    %v813 = vadd.f32 0.0, %v812
    %814 = vmatmul.bf16.gmra.mxu0 %v254
    %v815 = vpop.f32.mrf.mxu0
    %v816 = vadd.f32 0.0, %v815
    %v817 = vpop.f32.mrf.mxu0
    %v818 = vadd.f32 0.0, %v817
    %819 = vmatmul.bf16.gmra.mxu0 %v255
    %v820 = vpop.f32.mrf.mxu0
    %v821 = vadd.f32 0.0, %v820
    %v822 = vpop.f32.mrf.mxu0
    %v823 = vadd.f32 0.0, %v822
    %824 = vmatmul.bf16.gmra.mxu0 %v256
    %v825 = vpop.f32.mrf.mxu0
    %v826 = vadd.f32 0.0, %v825
    %v827 = vpop.f32.mrf.mxu0
    %v828 = vadd.f32 0.0, %v827
    %829 = vmatmul.bf16.gmra.mxu0 %v257
    %v830 = vpop.f32.mrf.mxu0
    %v831 = vadd.f32 0.0, %v830
    %v832 = vpop.f32.mrf.mxu0
    %v833 = vadd.f32 0.0, %v832
    %834 = vmatmul.bf16.gmra.mxu0 %v258
    %v835 = vpop.f32.mrf.mxu0
    %v836 = vpop.f32.mrf.mxu0
    %837 = vmatmul.bf16.gmra.mxu0 %v259
    %v838 = vpop.f32.mrf.mxu0
    %v839 = vpop.f32.mrf.mxu0
    %840 = vdwg.mxu0
    %841 = vmatpush.bf16.msra.mxu0 %v649
    %842 = vmatpush.bf16.msra.mxu0 %v637
    %843 = vmatpush.bf16.msra.mxu0 %v625
    %844 = vmatpush.bf16.msra.mxu0 %v613
    %845 = vmatpush.bf16.msra.mxu0 %v601
    %846 = vmatpush.bf16.msra.mxu0 %v589
    %847 = vmatpush.bf16.msra.mxu0 %v577
    %848 = vmatpush.bf16.msra.mxu0 %v565
    %849 = vmatmul.bf16.gmra.mxu0 %v244
    %v850 = vpop.f32.mrf.mxu0
    %v851 = vpop.f32.mrf.mxu0
    %852 = vmatmul.bf16.gmra.mxu0 %v245
    %v853 = vpop.f32.mrf.mxu0
    %v854 = vadd.f32 0.0, %v853
    %v855 = vpop.f32.mrf.mxu0
    %v856 = vadd.f32 0.0, %v855
    %857 = vmatmul.bf16.gmra.mxu0 %v246
    %v858 = vpop.f32.mrf.mxu0
    %v859 = vadd.f32 0.0, %v858
    %v860 = vpop.f32.mrf.mxu0
    %v861 = vadd.f32 0.0, %v860
    %862 = vmatmul.bf16.gmra.mxu0 %v247
    %v863 = vpop.f32.mrf.mxu0
    %v864 = vadd.f32 0.0, %v863
    %v865 = vpop.f32.mrf.mxu0
    %v866 = vadd.f32 0.0, %v865
    %867 = vmatmul.bf16.gmra.mxu0 %v248
    %v868 = vpop.f32.mrf.mxu0
    %v869 = vadd.f32 0.0, %v868
    %v870 = vpop.f32.mrf.mxu0
    %v871 = vadd.f32 0.0, %v870
    %872 = vmatmul.bf16.gmra.mxu0 %v249
    %v873 = vpop.f32.mrf.mxu0
    %v874 = vadd.f32 0.0, %v873
    %v875 = vpop.f32.mrf.mxu0
    %v876 = vadd.f32 0.0, %v875
    %877 = vmatmul.bf16.gmra.mxu0 %v250
    %v878 = vpop.f32.mrf.mxu0
    %v879 = vadd.f32 0.0, %v878
    %v880 = vpop.f32.mrf.mxu0
    %v881 = vadd.f32 0.0, %v880
    %882 = vmatmul.bf16.gmra.mxu0 %v251
    %v883 = vpop.f32.mrf.mxu0
    %v884 = vadd.f32 0.0, %v883
    %v885 = vpop.f32.mrf.mxu0
    %v886 = vadd.f32 0.0, %v885
    %887 = vmatmul.bf16.gmra.mxu0 %v252
    %v888 = vpop.f32.mrf.mxu0
    %v889 = vadd.f32 0.0, %v888
    %v890 = vpop.f32.mrf.mxu0
    %v891 = vadd.f32 0.0, %v890
    %892 = vmatmul.bf16.gmra.mxu0 %v253
    %v893 = vpop.f32.mrf.mxu0
    %v894 = vadd.f32 0.0, %v893
    %v895 = vpop.f32.mrf.mxu0
    %v896 = vadd.f32 0.0, %v895
    %897 = vmatmul.bf16.gmra.mxu0 %v254
    %v898 = vpop.f32.mrf.mxu0
    %v899 = vadd.f32 0.0, %v898
    %v900 = vpop.f32.mrf.mxu0
    %v901 = vadd.f32 0.0, %v900
    %902 = vmatmul.bf16.gmra.mxu0 %v255
    %v903 = vpop.f32.mrf.mxu0
    %v904 = vadd.f32 0.0, %v903
    %v905 = vpop.f32.mrf.mxu0
    %v906 = vadd.f32 0.0, %v905
    %907 = vmatmul.bf16.gmra.mxu0 %v256
    %v908 = vpop.f32.mrf.mxu0
    %v909 = vadd.f32 0.0, %v908
    %v910 = vpop.f32.mrf.mxu0
    %v911 = vadd.f32 0.0, %v910
    %912 = vmatmul.bf16.gmra.mxu0 %v257
    %v913 = vpop.f32.mrf.mxu0
    %v914 = vadd.f32 0.0, %v913
    %v915 = vpop.f32.mrf.mxu0
    %v916 = vadd.f32 0.0, %v915
    %917 = vmatmul.bf16.gmra.mxu0 %v258
    %v918 = vpop.f32.mrf.mxu0
    %v919 = vadd.f32 0.0, %v918
    %v920 = vpop.f32.mrf.mxu0
    %v921 = vadd.f32 0.0, %v920
    %922 = vmatmul.bf16.gmra.mxu0 %v259
    %v923 = vpop.f32.mrf.mxu0
    %v924 = vpop.f32.mrf.mxu0
    %925 = vdwg.mxu0
    %926 = vmatpush.bf16.msra.mxu0 %v650
    %927 = vmatpush.bf16.msra.mxu0 %v638
    %928 = vmatpush.bf16.msra.mxu0 %v626
    %929 = vmatpush.bf16.msra.mxu0 %v614
    %930 = vmatpush.bf16.msra.mxu0 %v602
    %931 = vmatpush.bf16.msra.mxu0 %v590
    %932 = vmatpush.bf16.msra.mxu0 %v578
    %933 = vmatpush.bf16.msra.mxu0 %v566
    %934 = vmatmul.bf16.gmra.mxu0 %v244
    %v935 = vpop.f32.mrf.mxu0
    %v936 = vpop.f32.mrf.mxu0
    %937 = vmatmul.bf16.gmra.mxu0 %v245
    %v938 = vpop.f32.mrf.mxu0
    %v939 = vpop.f32.mrf.mxu0
    %940 = vmatmul.bf16.gmra.mxu0 %v246
    %v941 = vpop.f32.mrf.mxu0
    %v942 = vadd.f32 0.0, %v941
    %v943 = vpop.f32.mrf.mxu0
    %v944 = vadd.f32 0.0, %v943
    %945 = vmatmul.bf16.gmra.mxu0 %v247
    %v946 = vpop.f32.mrf.mxu0
    %v947 = vadd.f32 0.0, %v946
    %v948 = vpop.f32.mrf.mxu0
    %v949 = vadd.f32 0.0, %v948
    %950 = vmatmul.bf16.gmra.mxu0 %v248
    %v951 = vpop.f32.mrf.mxu0
    %v952 = vadd.f32 0.0, %v951
    %v953 = vpop.f32.mrf.mxu0
    %v954 = vadd.f32 0.0, %v953
    %955 = vmatmul.bf16.gmra.mxu0 %v249
    %v956 = vpop.f32.mrf.mxu0
    %v957 = vadd.f32 0.0, %v956
    %v958 = vpop.f32.mrf.mxu0
    %v959 = vadd.f32 0.0, %v958
    %960 = vmatmul.bf16.gmra.mxu0 %v250
    %v961 = vpop.f32.mrf.mxu0
    %v962 = vadd.f32 0.0, %v961
    %v963 = vpop.f32.mrf.mxu0
    %v964 = vadd.f32 0.0, %v963
    %965 = vmatmul.bf16.gmra.mxu0 %v251
    %v966 = vpop.f32.mrf.mxu0
    %v967 = vadd.f32 0.0, %v966
    %v968 = vpop.f32.mrf.mxu0
    %v969 = vadd.f32 0.0, %v968
    %970 = vmatmul.bf16.gmra.mxu0 %v252
    %v971 = vpop.f32.mrf.mxu0
    %v972 = vadd.f32 0.0, %v971
    %v973 = vpop.f32.mrf.mxu0
    %v974 = vadd.f32 0.0, %v973
    %975 = vmatmul.bf16.gmra.mxu0 %v253
    %v976 = vpop.f32.mrf.mxu0
    %v977 = vadd.f32 0.0, %v976
    %v978 = vpop.f32.mrf.mxu0
    %v979 = vadd.f32 0.0, %v978
    %980 = vmatmul.bf16.gmra.mxu0 %v254
    %v981 = vpop.f32.mrf.mxu0
    %v982 = vadd.f32 0.0, %v981
    %v983 = vpop.f32.mrf.mxu0
    %v984 = vadd.f32 0.0, %v983
    %985 = vmatmul.bf16.gmra.mxu0 %v255
    %v986 = vpop.f32.mrf.mxu0
    %v987 = vadd.f32 0.0, %v986
    %v988 = vpop.f32.mrf.mxu0
    %v989 = vadd.f32 0.0, %v988
    %990 = vmatmul.bf16.gmra.mxu0 %v256
    %v991 = vpop.f32.mrf.mxu0
    %v992 = vadd.f32 0.0, %v991
    %v993 = vpop.f32.mrf.mxu0
    %v994 = vadd.f32 0.0, %v993
    %995 = vmatmul.bf16.gmra.mxu0 %v257
    %v996 = vpop.f32.mrf.mxu0
    %v997 = vadd.f32 0.0, %v996
    %v998 = vpop.f32.mrf.mxu0
    %v999 = vadd.f32 0.0, %v998
    %1000 = vmatmul.bf16.gmra.mxu0 %v258
    %v1001 = vpop.f32.mrf.mxu0
    %v1002 = vadd.f32 0.0, %v1001
    %v1003 = vpop.f32.mrf.mxu0
    %v1004 = vadd.f32 0.0, %v1003
    %1005 = vmatmul.bf16.gmra.mxu0 %v259
    %v1006 = vpop.f32.mrf.mxu0
    %v1007 = vadd.f32 0.0, %v1006
    %v1008 = vpop.f32.mrf.mxu0
    %v1009 = vadd.f32 0.0, %v1008
    %1010 = vdwg.mxu0
    %1011 = vmatpush.bf16.msra.mxu0 %v651
    %1012 = vmatpush.bf16.msra.mxu0 %v639
    %1013 = vmatpush.bf16.msra.mxu0 %v627
    %1014 = vmatpush.bf16.msra.mxu0 %v615
    %1015 = vmatpush.bf16.msra.mxu0 %v603
    %1016 = vmatpush.bf16.msra.mxu0 %v591
    %1017 = vmatpush.bf16.msra.mxu0 %v579
    %1018 = vmatpush.bf16.msra.mxu0 %v567
    %1019 = vmatmul.bf16.gmra.mxu0 %v244
    %v1020 = vpop.f32.mrf.mxu0
    %v1021 = vadd.f32 0.0, %v1020
    %v1022 = vpop.f32.mrf.mxu0
    %v1023 = vadd.f32 0.0, %v1022
    %1024 = vmatmul.bf16.gmra.mxu0 %v245
    %v1025 = vpop.f32.mrf.mxu0
    %v1026 = vadd.f32 0.0, %v1025
    %v1027 = vpop.f32.mrf.mxu0
    %v1028 = vadd.f32 0.0, %v1027
    %1029 = vmatmul.bf16.gmra.mxu0 %v246
    %v1030 = vpop.f32.mrf.mxu0
    %v1031 = vadd.f32 0.0, %v1030
    %v1032 = vpop.f32.mrf.mxu0
    %v1033 = vadd.f32 0.0, %v1032
    %1034 = vmatmul.bf16.gmra.mxu0 %v247
    %v1035 = vpop.f32.mrf.mxu0
    %v1036 = vadd.f32 0.0, %v1035
    %v1037 = vpop.f32.mrf.mxu0
    %v1038 = vadd.f32 0.0, %v1037
    %1039 = vmatmul.bf16.gmra.mxu0 %v248
    %v1040 = vpop.f32.mrf.mxu0
    %v1041 = vadd.f32 0.0, %v1040
    %v1042 = vpop.f32.mrf.mxu0
    %v1043 = vadd.f32 0.0, %v1042
    %1044 = vmatmul.bf16.gmra.mxu0 %v249
    %v1045 = vpop.f32.mrf.mxu0
    %v1046 = vadd.f32 0.0, %v1045
    %v1047 = vpop.f32.mrf.mxu0
    %v1048 = vadd.f32 0.0, %v1047
    %1049 = vmatmul.bf16.gmra.mxu0 %v250
    %v1050 = vpop.f32.mrf.mxu0
    %v1051 = vadd.f32 0.0, %v1050
    %v1052 = vpop.f32.mrf.mxu0
    %v1053 = vadd.f32 0.0, %v1052
    %1054 = vmatmul.bf16.gmra.mxu0 %v251
    %v1055 = vpop.f32.mrf.mxu0
    %v1056 = vadd.f32 0.0, %v1055
    %v1057 = vpop.f32.mrf.mxu0
    %v1058 = vadd.f32 0.0, %v1057
    %1059 = vmatmul.bf16.gmra.mxu0 %v252
    %v1060 = vpop.f32.mrf.mxu0
    %v1061 = vadd.f32 0.0, %v1060
    %v1062 = vpop.f32.mrf.mxu0
    %v1063 = vadd.f32 0.0, %v1062
    %1064 = vmatmul.bf16.gmra.mxu0 %v253
    %v1065 = vpop.f32.mrf.mxu0
    %v1066 = vadd.f32 0.0, %v1065
    %v1067 = vpop.f32.mrf.mxu0
    %v1068 = vadd.f32 0.0, %v1067
    %1069 = vmatmul.bf16.gmra.mxu0 %v254
    %v1070 = vpop.f32.mrf.mxu0
    %v1071 = vadd.f32 0.0, %v1070
    %v1072 = vpop.f32.mrf.mxu0
    %v1073 = vadd.f32 0.0, %v1072
    %1074 = vmatmul.bf16.gmra.mxu0 %v255
    %v1075 = vpop.f32.mrf.mxu0
    %v1076 = vadd.f32 0.0, %v1075
    %v1077 = vpop.f32.mrf.mxu0
    %v1078 = vadd.f32 0.0, %v1077
    %1079 = vmatmul.bf16.gmra.mxu0 %v256
    %v1080 = vpop.f32.mrf.mxu0
    %v1081 = vadd.f32 0.0, %v1080
    %v1082 = vpop.f32.mrf.mxu0
    %v1083 = vadd.f32 0.0, %v1082
    %1084 = vmatmul.bf16.gmra.mxu0 %v257
    %v1085 = vpop.f32.mrf.mxu0
    %v1086 = vpop.f32.mrf.mxu0
    %1087 = vmatmul.bf16.gmra.mxu0 %v258
    %v1088 = vpop.f32.mrf.mxu0
    %v1089 = vpop.f32.mrf.mxu0
    %1090 = vmatmul.bf16.gmra.mxu0 %v259
    %v1091 = vpop.f32.mrf.mxu0
    %v1092 = vpop.f32.mrf.mxu0
    %1093 = vdwg.mxu0
    %1094 = vmatpush.bf16.msra.mxu0 %v652
    %1095 = vmatpush.bf16.msra.mxu0 %v640
    %1096 = vmatpush.bf16.msra.mxu0 %v628
    %1097 = vmatpush.bf16.msra.mxu0 %v616
    %1098 = vmatpush.bf16.msra.mxu0 %v604
    %1099 = vmatpush.bf16.msra.mxu0 %v592
    %1100 = vmatpush.bf16.msra.mxu0 %v580
    %1101 = vmatpush.bf16.msra.mxu0 %v568
    %1102 = vmatmul.bf16.gmra.mxu0 %v244
    %v1103 = vpop.f32.mrf.mxu0
    %v1104 = vpop.f32.mrf.mxu0
    %1105 = vmatmul.bf16.gmra.mxu0 %v245
    %v1106 = vpop.f32.mrf.mxu0
    %v1107 = vadd.f32 0.0, %v1106
    %v1108 = vpop.f32.mrf.mxu0
    %v1109 = vadd.f32 0.0, %v1108
    %1110 = vmatmul.bf16.gmra.mxu0 %v246
    %v1111 = vpop.f32.mrf.mxu0
    %v1112 = vadd.f32 0.0, %v1111
    %v1113 = vpop.f32.mrf.mxu0
    %v1114 = vadd.f32 0.0, %v1113
    %1115 = vmatmul.bf16.gmra.mxu0 %v247
    %v1116 = vpop.f32.mrf.mxu0
    %v1117 = vadd.f32 0.0, %v1116
    %v1118 = vpop.f32.mrf.mxu0
    %v1119 = vadd.f32 0.0, %v1118
    %1120 = vmatmul.bf16.gmra.mxu0 %v248
    %v1121 = vpop.f32.mrf.mxu0
    %v1122 = vadd.f32 0.0, %v1121
    %v1123 = vpop.f32.mrf.mxu0
    %v1124 = vadd.f32 0.0, %v1123
    %1125 = vmatmul.bf16.gmra.mxu0 %v249
    %v1126 = vpop.f32.mrf.mxu0
    %v1127 = vadd.f32 0.0, %v1126
    %v1128 = vpop.f32.mrf.mxu0
    %v1129 = vadd.f32 0.0, %v1128
    %1130 = vmatmul.bf16.gmra.mxu0 %v250
    %v1131 = vpop.f32.mrf.mxu0
    %v1132 = vadd.f32 0.0, %v1131
    %v1133 = vpop.f32.mrf.mxu0
    %v1134 = vadd.f32 0.0, %v1133
    %1135 = vmatmul.bf16.gmra.mxu0 %v251
    %v1136 = vpop.f32.mrf.mxu0
    %v1137 = vadd.f32 0.0, %v1136
    %v1138 = vpop.f32.mrf.mxu0
    %v1139 = vadd.f32 0.0, %v1138
    %1140 = vmatmul.bf16.gmra.mxu0 %v252
    %v1141 = vpop.f32.mrf.mxu0
    %v1142 = vadd.f32 0.0, %v1141
    %v1143 = vpop.f32.mrf.mxu0
    %v1144 = vadd.f32 0.0, %v1143
    %1145 = vmatmul.bf16.gmra.mxu0 %v253
    %v1146 = vpop.f32.mrf.mxu0
    %v1147 = vadd.f32 0.0, %v1146
    %v1148 = vpop.f32.mrf.mxu0
    %v1149 = vadd.f32 0.0, %v1148
    %1150 = vmatmul.bf16.gmra.mxu0 %v254
    %v1151 = vpop.f32.mrf.mxu0
    %v1152 = vadd.f32 0.0, %v1151
    %v1153 = vpop.f32.mrf.mxu0
    %v1154 = vadd.f32 0.0, %v1153
    %1155 = vmatmul.bf16.gmra.mxu0 %v255
    %v1156 = vpop.f32.mrf.mxu0
    %v1157 = vadd.f32 0.0, %v1156
    %v1158 = vpop.f32.mrf.mxu0
    %v1159 = vadd.f32 0.0, %v1158
    %1160 = vmatmul.bf16.gmra.mxu0 %v256
    %v1161 = vpop.f32.mrf.mxu0
    %v1162 = vadd.f32 0.0, %v1161
    %v1163 = vpop.f32.mrf.mxu0
    %v1164 = vadd.f32 0.0, %v1163
    %1165 = vmatmul.bf16.gmra.mxu0 %v257
    %v1166 = vpop.f32.mrf.mxu0
    %v1167 = vadd.f32 0.0, %v1166
    %v1168 = vpop.f32.mrf.mxu0
    %v1169 = vadd.f32 0.0, %v1168
    %1170 = vmatmul.bf16.gmra.mxu0 %v258
    %v1171 = vpop.f32.mrf.mxu0
    %v1172 = vpop.f32.mrf.mxu0
    %1173 = vmatmul.bf16.gmra.mxu0 %v259
    %v1174 = vpop.f32.mrf.mxu0
    %v1175 = vpop.f32.mrf.mxu0
    %1176 = vdwg.mxu0
    %1177 = vmatpush.bf16.msra.mxu0 %v653
    %1178 = vmatpush.bf16.msra.mxu0 %v641
    %1179 = vmatpush.bf16.msra.mxu0 %v629
    %1180 = vmatpush.bf16.msra.mxu0 %v617
    %1181 = vmatpush.bf16.msra.mxu0 %v605
    %1182 = vmatpush.bf16.msra.mxu0 %v593
    %1183 = vmatpush.bf16.msra.mxu0 %v581
    %1184 = vmatpush.bf16.msra.mxu0 %v569
    %1185 = vmatmul.bf16.gmra.mxu0 %v244
    %v1186 = vpop.f32.mrf.mxu0
    %v1187 = vpop.f32.mrf.mxu0
    %1188 = vmatmul.bf16.gmra.mxu0 %v245
    %v1189 = vpop.f32.mrf.mxu0
    %v1190 = vpop.f32.mrf.mxu0
    %1191 = vmatmul.bf16.gmra.mxu0 %v246
    %v1192 = vpop.f32.mrf.mxu0
    %v1193 = vadd.f32 0.0, %v1192
    %v1194 = vpop.f32.mrf.mxu0
    %v1195 = vadd.f32 0.0, %v1194
    %1196 = vmatmul.bf16.gmra.mxu0 %v247
    %v1197 = vpop.f32.mrf.mxu0
    %v1198 = vadd.f32 0.0, %v1197
    %v1199 = vpop.f32.mrf.mxu0
    %v1200 = vadd.f32 0.0, %v1199
    %1201 = vmatmul.bf16.gmra.mxu0 %v248
    %v1202 = vpop.f32.mrf.mxu0
    %v1203 = vadd.f32 0.0, %v1202
    %v1204 = vpop.f32.mrf.mxu0
    %v1205 = vadd.f32 0.0, %v1204
    %1206 = vmatmul.bf16.gmra.mxu0 %v249
    %v1207 = vpop.f32.mrf.mxu0
    %v1208 = vadd.f32 0.0, %v1207
    %v1209 = vpop.f32.mrf.mxu0
    %v1210 = vadd.f32 0.0, %v1209
    %1211 = vmatmul.bf16.gmra.mxu0 %v250
    %v1212 = vpop.f32.mrf.mxu0
    %v1213 = vadd.f32 0.0, %v1212
    %v1214 = vpop.f32.mrf.mxu0
    %v1215 = vadd.f32 0.0, %v1214
    %1216 = vmatmul.bf16.gmra.mxu0 %v251
    %v1217 = vpop.f32.mrf.mxu0
    %v1218 = vadd.f32 0.0, %v1217
    %v1219 = vpop.f32.mrf.mxu0
    %v1220 = vadd.f32 0.0, %v1219
    %1221 = vmatmul.bf16.gmra.mxu0 %v252
    %v1222 = vpop.f32.mrf.mxu0
    %v1223 = vadd.f32 0.0, %v1222
    %v1224 = vpop.f32.mrf.mxu0
    %v1225 = vadd.f32 0.0, %v1224
    %1226 = vmatmul.bf16.gmra.mxu0 %v253
    %v1227 = vpop.f32.mrf.mxu0
    %v1228 = vadd.f32 0.0, %v1227
    %v1229 = vpop.f32.mrf.mxu0
    %v1230 = vadd.f32 0.0, %v1229
    %1231 = vmatmul.bf16.gmra.mxu0 %v254
    %v1232 = vpop.f32.mrf.mxu0
    %v1233 = vadd.f32 0.0, %v1232
    %v1234 = vpop.f32.mrf.mxu0
    %v1235 = vadd.f32 0.0, %v1234
    %1236 = vmatmul.bf16.gmra.mxu0 %v255
    %v1237 = vpop.f32.mrf.mxu0
    %v1238 = vadd.f32 0.0, %v1237
    %v1239 = vpop.f32.mrf.mxu0
    %v1240 = vadd.f32 0.0, %v1239
    %1241 = vmatmul.bf16.gmra.mxu0 %v256
    %v1242 = vpop.f32.mrf.mxu0
    %v1243 = vadd.f32 0.0, %v1242
    %v1244 = vpop.f32.mrf.mxu0
    %v1245 = vadd.f32 0.0, %v1244
    %1246 = vmatmul.bf16.gmra.mxu0 %v257
    %v1247 = vpop.f32.mrf.mxu0
    %v1248 = vadd.f32 0.0, %v1247
    %v1249 = vpop.f32.mrf.mxu0
    %v1250 = vadd.f32 0.0, %v1249
    %1251 = vmatmul.bf16.gmra.mxu0 %v258
    %v1252 = vpop.f32.mrf.mxu0
    %v1253 = vadd.f32 0.0, %v1252
    %v1254 = vpop.f32.mrf.mxu0
    %v1255 = vadd.f32 0.0, %v1254
    %1256 = vmatmul.bf16.gmra.mxu0 %v259
    %v1257 = vpop.f32.mrf.mxu0
    %v1258 = vpop.f32.mrf.mxu0
    %1259 = vdwg.mxu0
    %1260 = vmatpush.bf16.msra.mxu0 %v654
    %1261 = vmatpush.bf16.msra.mxu0 %v642
    %1262 = vmatpush.bf16.msra.mxu0 %v630
    %1263 = vmatpush.bf16.msra.mxu0 %v618
    %1264 = vmatpush.bf16.msra.mxu0 %v606
    %1265 = vmatpush.bf16.msra.mxu0 %v594
    %1266 = vmatpush.bf16.msra.mxu0 %v582
    %1267 = vmatpush.bf16.msra.mxu0 %v570
    %1268 = vmatmul.bf16.gmra.mxu0 %v244
    %v1269 = vpop.f32.mrf.mxu0
    %v1270 = vpop.f32.mrf.mxu0
    %1271 = vmatmul.bf16.gmra.mxu0 %v245
    %v1272 = vpop.f32.mrf.mxu0
    %v1273 = vpop.f32.mrf.mxu0
    %1274 = vmatmul.bf16.gmra.mxu0 %v246
    %v1275 = vpop.f32.mrf.mxu0
    %v1276 = vpop.f32.mrf.mxu0
    %1277 = vmatmul.bf16.gmra.mxu0 %v247
    %v1278 = vpop.f32.mrf.mxu0
    %v1279 = vadd.f32 0.0, %v1278
    %v1280 = vpop.f32.mrf.mxu0
    %v1281 = vadd.f32 0.0, %v1280
    %1282 = vmatmul.bf16.gmra.mxu0 %v248
    %v1283 = vpop.f32.mrf.mxu0
    %v1284 = vadd.f32 0.0, %v1283
    %v1285 = vpop.f32.mrf.mxu0
    %v1286 = vadd.f32 0.0, %v1285
    %1287 = vmatmul.bf16.gmra.mxu0 %v249
    %v1288 = vpop.f32.mrf.mxu0
    %v1289 = vadd.f32 0.0, %v1288
    %v1290 = vpop.f32.mrf.mxu0
    %v1291 = vadd.f32 0.0, %v1290
    %1292 = vmatmul.bf16.gmra.mxu0 %v250
    %v1293 = vpop.f32.mrf.mxu0
    %v1294 = vadd.f32 0.0, %v1293
    %v1295 = vpop.f32.mrf.mxu0
    %v1296 = vadd.f32 0.0, %v1295
    %1297 = vmatmul.bf16.gmra.mxu0 %v251
    %v1298 = vpop.f32.mrf.mxu0
    %v1299 = vadd.f32 0.0, %v1298
    %v1300 = vpop.f32.mrf.mxu0
    %v1301 = vadd.f32 0.0, %v1300
    %1302 = vmatmul.bf16.gmra.mxu0 %v252
    %v1303 = vpop.f32.mrf.mxu0
    %v1304 = vadd.f32 0.0, %v1303
    %v1305 = vpop.f32.mrf.mxu0
    %v1306 = vadd.f32 0.0, %v1305
    %1307 = vmatmul.bf16.gmra.mxu0 %v253
    %v1308 = vpop.f32.mrf.mxu0
    %v1309 = vadd.f32 0.0, %v1308
    %v1310 = vpop.f32.mrf.mxu0
    %v1311 = vadd.f32 0.0, %v1310
    %1312 = vmatmul.bf16.gmra.mxu0 %v254
    %v1313 = vpop.f32.mrf.mxu0
    %v1314 = vadd.f32 0.0, %v1313
    %v1315 = vpop.f32.mrf.mxu0
    %v1316 = vadd.f32 0.0, %v1315
    %1317 = vmatmul.bf16.gmra.mxu0 %v255
    %v1318 = vpop.f32.mrf.mxu0
    %v1319 = vadd.f32 0.0, %v1318
    %v1320 = vpop.f32.mrf.mxu0
    %v1321 = vadd.f32 0.0, %v1320
    %1322 = vmatmul.bf16.gmra.mxu0 %v256
    %v1323 = vpop.f32.mrf.mxu0
    %v1324 = vadd.f32 0.0, %v1323
    %v1325 = vpop.f32.mrf.mxu0
    %v1326 = vadd.f32 0.0, %v1325
    %1327 = vmatmul.bf16.gmra.mxu0 %v257
    %v1328 = vpop.f32.mrf.mxu0
    %v1329 = vadd.f32 0.0, %v1328
    %v1330 = vpop.f32.mrf.mxu0
    %v1331 = vadd.f32 0.0, %v1330
    %1332 = vmatmul.bf16.gmra.mxu0 %v258
    %v1333 = vpop.f32.mrf.mxu0
    %v1334 = vadd.f32 0.0, %v1333
    %v1335 = vpop.f32.mrf.mxu0
    %v1336 = vadd.f32 0.0, %v1335
    %1337 = vmatmul.bf16.gmra.mxu0 %v259
    %v1338 = vpop.f32.mrf.mxu0
    %v1339 = vadd.f32 0.0, %v1338
    %v1340 = vpop.f32.mrf.mxu0
    %v1341 = vadd.f32 0.0, %v1340
    %1342 = vdwg.mxu0
    %1343 = vmatpush.bf16.msra.mxu0 %v655
    %1344 = vmatpush.bf16.msra.mxu0 %v643
    %1345 = vmatpush.bf16.msra.mxu0 %v631
    %1346 = vmatpush.bf16.msra.mxu0 %v619
    %1347 = vmatpush.bf16.msra.mxu0 %v607
    %1348 = vmatpush.bf16.msra.mxu0 %v595
    %1349 = vmatpush.bf16.msra.mxu0 %v583
    %1350 = vmatpush.bf16.msra.mxu0 %v571
    %1351 = vmatmul.bf16.gmra.mxu0 %v244
    %v1352 = vpop.f32.mrf.mxu0
    %v1353 = vadd.f32 0.0, %v1352
    %v1354 = vpop.f32.mrf.mxu0
    %v1355 = vadd.f32 0.0, %v1354
    %1356 = vmatmul.bf16.gmra.mxu0 %v245
    %v1357 = vpop.f32.mrf.mxu0
    %v1358 = vadd.f32 0.0, %v1357
    %v1359 = vpop.f32.mrf.mxu0
    %v1360 = vadd.f32 0.0, %v1359
    %1361 = vmatmul.bf16.gmra.mxu0 %v246
    %v1362 = vpop.f32.mrf.mxu0
    %v1363 = vadd.f32 0.0, %v1362
    %v1364 = vpop.f32.mrf.mxu0
    %v1365 = vadd.f32 0.0, %v1364
    %1366 = vmatmul.bf16.gmra.mxu0 %v247
    %v1367 = vpop.f32.mrf.mxu0
    %v1368 = vadd.f32 0.0, %v1367
    %v1369 = vpop.f32.mrf.mxu0
    %v1370 = vadd.f32 0.0, %v1369
    %1371 = vmatmul.bf16.gmra.mxu0 %v248
    %v1372 = vpop.f32.mrf.mxu0
    %v1373 = vadd.f32 0.0, %v1372
    %v1374 = vpop.f32.mrf.mxu0
    %v1375 = vadd.f32 0.0, %v1374
    %1376 = vmatmul.bf16.gmra.mxu0 %v249
    %v1377 = vpop.f32.mrf.mxu0
    %v1378 = vadd.f32 0.0, %v1377
    %v1379 = vpop.f32.mrf.mxu0
    %v1380 = vadd.f32 0.0, %v1379
    %1381 = vmatmul.bf16.gmra.mxu0 %v250
    %v1382 = vpop.f32.mrf.mxu0
    %v1383 = vadd.f32 0.0, %v1382
    %v1384 = vpop.f32.mrf.mxu0
    %v1385 = vadd.f32 0.0, %v1384
    %1386 = vmatmul.bf16.gmra.mxu0 %v251
    %v1387 = vpop.f32.mrf.mxu0
    %v1388 = vadd.f32 0.0, %v1387
    %v1389 = vpop.f32.mrf.mxu0
    %v1390 = vadd.f32 0.0, %v1389
    %1391 = vmatmul.bf16.gmra.mxu0 %v252
    %v1392 = vpop.f32.mrf.mxu0
    %v1393 = vadd.f32 0.0, %v1392
    %v1394 = vpop.f32.mrf.mxu0
    %v1395 = vadd.f32 0.0, %v1394
    %1396 = vmatmul.bf16.gmra.mxu0 %v253
    %v1397 = vpop.f32.mrf.mxu0
    %v1398 = vadd.f32 0.0, %v1397
    %v1399 = vpop.f32.mrf.mxu0
    %v1400 = vadd.f32 0.0, %v1399
    %1401 = vmatmul.bf16.gmra.mxu0 %v254
    %v1402 = vpop.f32.mrf.mxu0
    %v1403 = vadd.f32 0.0, %v1402
    %v1404 = vpop.f32.mrf.mxu0
    %v1405 = vadd.f32 0.0, %v1404
    %1406 = vmatmul.bf16.gmra.mxu0 %v255
    %v1407 = vpop.f32.mrf.mxu0
    %v1408 = vadd.f32 0.0, %v1407
    %v1409 = vpop.f32.mrf.mxu0
    %v1410 = vadd.f32 0.0, %v1409
    %1411 = vmatmul.bf16.gmra.mxu0 %v256
    %v1412 = vpop.f32.mrf.mxu0
    %v1413 = vpop.f32.mrf.mxu0
    %1414 = vmatmul.bf16.gmra.mxu0 %v257
    %v1415 = vpop.f32.mrf.mxu0
    %v1416 = vpop.f32.mrf.mxu0
    %1417 = vmatmul.bf16.gmra.mxu0 %v258
    %v1418 = vpop.f32.mrf.mxu0
    %v1419 = vpop.f32.mrf.mxu0
    %1420 = vmatmul.bf16.gmra.mxu0 %v259
    %v1421 = vpop.f32.mrf.mxu0
    %v1422 = vpop.f32.mrf.mxu0
    %1423 = vdwg.mxu0
    %1424 = vmatpush.bf16.msra.mxu0 %v656
    %1425 = vmatpush.bf16.msra.mxu0 %v644
    %1426 = vmatpush.bf16.msra.mxu0 %v632
    %1427 = vmatpush.bf16.msra.mxu0 %v620
    %1428 = vmatpush.bf16.msra.mxu0 %v608
    %1429 = vmatpush.bf16.msra.mxu0 %v596
    %1430 = vmatpush.bf16.msra.mxu0 %v584
    %1431 = vmatpush.bf16.msra.mxu0 %v572
    %1432 = vmatmul.bf16.gmra.mxu0 %v244
    %v1433 = vpop.f32.mrf.mxu0
    %v1434 = vpop.f32.mrf.mxu0
    %1435 = vmatmul.bf16.gmra.mxu0 %v245
    %v1436 = vpop.f32.mrf.mxu0
    %v1437 = vadd.f32 0.0, %v1436
    %v1438 = vpop.f32.mrf.mxu0
    %v1439 = vadd.f32 0.0, %v1438
    %1440 = vmatmul.bf16.gmra.mxu0 %v246
    %v1441 = vpop.f32.mrf.mxu0
    %v1442 = vadd.f32 0.0, %v1441
    %v1443 = vpop.f32.mrf.mxu0
    %v1444 = vadd.f32 0.0, %v1443
    %1445 = vmatmul.bf16.gmra.mxu0 %v247
    %v1446 = vpop.f32.mrf.mxu0
    %v1447 = vadd.f32 0.0, %v1446
    %v1448 = vpop.f32.mrf.mxu0
    %v1449 = vadd.f32 0.0, %v1448
    %1450 = vmatmul.bf16.gmra.mxu0 %v248
    %v1451 = vpop.f32.mrf.mxu0
    %v1452 = vadd.f32 0.0, %v1451
    %v1453 = vpop.f32.mrf.mxu0
    %v1454 = vadd.f32 0.0, %v1453
    %1455 = vmatmul.bf16.gmra.mxu0 %v249
    %v1456 = vpop.f32.mrf.mxu0
    %v1457 = vadd.f32 0.0, %v1456
    %v1458 = vpop.f32.mrf.mxu0
    %v1459 = vadd.f32 0.0, %v1458
    %1460 = vmatmul.bf16.gmra.mxu0 %v250
    %v1461 = vpop.f32.mrf.mxu0
    %v1462 = vadd.f32 0.0, %v1461
    %v1463 = vpop.f32.mrf.mxu0
    %v1464 = vadd.f32 0.0, %v1463
    %1465 = vmatmul.bf16.gmra.mxu0 %v251
    %v1466 = vpop.f32.mrf.mxu0
    %v1467 = vadd.f32 0.0, %v1466
    %v1468 = vpop.f32.mrf.mxu0
    %v1469 = vadd.f32 0.0, %v1468
    %1470 = vmatmul.bf16.gmra.mxu0 %v252
    %v1471 = vpop.f32.mrf.mxu0
    %v1472 = vadd.f32 0.0, %v1471
    %v1473 = vpop.f32.mrf.mxu0
    %v1474 = vadd.f32 0.0, %v1473
    %1475 = vmatmul.bf16.gmra.mxu0 %v253
    %v1476 = vpop.f32.mrf.mxu0
    %v1477 = vadd.f32 0.0, %v1476
    %v1478 = vpop.f32.mrf.mxu0
    %v1479 = vadd.f32 0.0, %v1478
    %1480 = vmatmul.bf16.gmra.mxu0 %v254
    %v1481 = vpop.f32.mrf.mxu0
    %v1482 = vadd.f32 0.0, %v1481
    %v1483 = vpop.f32.mrf.mxu0
    %v1484 = vadd.f32 0.0, %v1483
    %1485 = vmatmul.bf16.gmra.mxu0 %v255
    %v1486 = vpop.f32.mrf.mxu0
    %v1487 = vadd.f32 0.0, %v1486
    %v1488 = vpop.f32.mrf.mxu0
    %v1489 = vadd.f32 0.0, %v1488
    %1490 = vmatmul.bf16.gmra.mxu0 %v256
    %v1491 = vpop.f32.mrf.mxu0
    %v1492 = vadd.f32 0.0, %v1491
    %v1493 = vpop.f32.mrf.mxu0
    %v1494 = vadd.f32 0.0, %v1493
    %1495 = vmatmul.bf16.gmra.mxu0 %v257
    %v1496 = vpop.f32.mrf.mxu0
    %v1497 = vpop.f32.mrf.mxu0
    %1498 = vmatmul.bf16.gmra.mxu0 %v258
    %v1499 = vpop.f32.mrf.mxu0
    %v1500 = vpop.f32.mrf.mxu0
    %1501 = vmatmul.bf16.gmra.mxu0 %v259
    %v1502 = vpop.f32.mrf.mxu0
    %v1503 = vpop.f32.mrf.mxu0
    %1504 = vdwg.mxu0
    %1505 = vmatpush.bf16.msra.mxu0 %v657
    %1506 = vmatpush.bf16.msra.mxu0 %v645
    %1507 = vmatpush.bf16.msra.mxu0 %v633
    %1508 = vmatpush.bf16.msra.mxu0 %v621
    %1509 = vmatpush.bf16.msra.mxu0 %v609
    %1510 = vmatpush.bf16.msra.mxu0 %v597
    %1511 = vmatpush.bf16.msra.mxu0 %v585
    %1512 = vmatpush.bf16.msra.mxu0 %v573
    %1513 = vmatmul.bf16.gmra.mxu0 %v244
    %v1514 = vpop.f32.mrf.mxu0
    %v1515 = vpop.f32.mrf.mxu0
    %1516 = vmatmul.bf16.gmra.mxu0 %v245
    %v1517 = vpop.f32.mrf.mxu0
    %v1518 = vpop.f32.mrf.mxu0
    %1519 = vmatmul.bf16.gmra.mxu0 %v246
    %v1520 = vpop.f32.mrf.mxu0
    %v1521 = vadd.f32 0.0, %v1520
    %v1522 = vpop.f32.mrf.mxu0
    %v1523 = vadd.f32 0.0, %v1522
    %1524 = vmatmul.bf16.gmra.mxu0 %v247
    %v1525 = vpop.f32.mrf.mxu0
    %v1526 = vadd.f32 0.0, %v1525
    %v1527 = vpop.f32.mrf.mxu0
    %v1528 = vadd.f32 0.0, %v1527
    %1529 = vmatmul.bf16.gmra.mxu0 %v248
    %v1530 = vpop.f32.mrf.mxu0
    %v1531 = vadd.f32 0.0, %v1530
    %v1532 = vpop.f32.mrf.mxu0
    %v1533 = vadd.f32 0.0, %v1532
    %1534 = vmatmul.bf16.gmra.mxu0 %v249
    %v1535 = vpop.f32.mrf.mxu0
    %v1536 = vadd.f32 0.0, %v1535
    %v1537 = vpop.f32.mrf.mxu0
    %v1538 = vadd.f32 0.0, %v1537
    %1539 = vmatmul.bf16.gmra.mxu0 %v250
    %v1540 = vpop.f32.mrf.mxu0
    %v1541 = vadd.f32 0.0, %v1540
    %v1542 = vpop.f32.mrf.mxu0
    %v1543 = vadd.f32 0.0, %v1542
    %1544 = vmatmul.bf16.gmra.mxu0 %v251
    %v1545 = vpop.f32.mrf.mxu0
    %v1546 = vadd.f32 0.0, %v1545
    %v1547 = vpop.f32.mrf.mxu0
    %v1548 = vadd.f32 0.0, %v1547
    %1549 = vmatmul.bf16.gmra.mxu0 %v252
    %v1550 = vpop.f32.mrf.mxu0
    %v1551 = vadd.f32 0.0, %v1550
    %v1552 = vpop.f32.mrf.mxu0
    %v1553 = vadd.f32 0.0, %v1552
    %1554 = vmatmul.bf16.gmra.mxu0 %v253
    %v1555 = vpop.f32.mrf.mxu0
    %v1556 = vadd.f32 0.0, %v1555
    %v1557 = vpop.f32.mrf.mxu0
    %v1558 = vadd.f32 0.0, %v1557
    %1559 = vmatmul.bf16.gmra.mxu0 %v254
    %v1560 = vpop.f32.mrf.mxu0
    %v1561 = vadd.f32 0.0, %v1560
    %v1562 = vpop.f32.mrf.mxu0
    %v1563 = vadd.f32 0.0, %v1562
    %1564 = vmatmul.bf16.gmra.mxu0 %v255
    %v1565 = vpop.f32.mrf.mxu0
    %v1566 = vadd.f32 0.0, %v1565
    %v1567 = vpop.f32.mrf.mxu0
    %v1568 = vadd.f32 0.0, %v1567
    %1569 = vmatmul.bf16.gmra.mxu0 %v256
    %v1570 = vpop.f32.mrf.mxu0
    %v1571 = vadd.f32 0.0, %v1570
    %v1572 = vpop.f32.mrf.mxu0
    %v1573 = vadd.f32 0.0, %v1572
    %1574 = vmatmul.bf16.gmra.mxu0 %v257
    %v1575 = vpop.f32.mrf.mxu0
    %v1576 = vadd.f32 0.0, %v1575
    %v1577 = vpop.f32.mrf.mxu0
    %v1578 = vadd.f32 0.0, %v1577
    %1579 = vmatmul.bf16.gmra.mxu0 %v258
    %v1580 = vpop.f32.mrf.mxu0
    %v1581 = vpop.f32.mrf.mxu0
    %1582 = vmatmul.bf16.gmra.mxu0 %v259
    %v1583 = vpop.f32.mrf.mxu0
    %v1584 = vpop.f32.mrf.mxu0
    %1585 = vdwg.mxu0
    %1586 = vmatpush.bf16.msra.mxu0 %v658
    %1587 = vmatpush.bf16.msra.mxu0 %v646
    %1588 = vmatpush.bf16.msra.mxu0 %v634
    %1589 = vmatpush.bf16.msra.mxu0 %v622
    %1590 = vmatpush.bf16.msra.mxu0 %v610
    %1591 = vmatpush.bf16.msra.mxu0 %v598
    %1592 = vmatpush.bf16.msra.mxu0 %v586
    %1593 = vmatpush.bf16.msra.mxu0 %v574
    %1594 = vmatmul.bf16.gmra.mxu0 %v244
    %v1595 = vpop.f32.mrf.mxu0
    %v1596 = vpop.f32.mrf.mxu0
    %1597 = vmatmul.bf16.gmra.mxu0 %v245
    %v1598 = vpop.f32.mrf.mxu0
    %v1599 = vpop.f32.mrf.mxu0
    %1600 = vmatmul.bf16.gmra.mxu0 %v246
    %v1601 = vpop.f32.mrf.mxu0
    %v1602 = vpop.f32.mrf.mxu0
    %1603 = vmatmul.bf16.gmra.mxu0 %v247
    %v1604 = vpop.f32.mrf.mxu0
    %v1605 = vadd.f32 0.0, %v1604
    %v1606 = vpop.f32.mrf.mxu0
    %v1607 = vadd.f32 0.0, %v1606
    %1608 = vmatmul.bf16.gmra.mxu0 %v248
    %v1609 = vpop.f32.mrf.mxu0
    %v1610 = vadd.f32 0.0, %v1609
    %v1611 = vpop.f32.mrf.mxu0
    %v1612 = vadd.f32 0.0, %v1611
    %1613 = vmatmul.bf16.gmra.mxu0 %v249
    %v1614 = vpop.f32.mrf.mxu0
    %v1615 = vadd.f32 0.0, %v1614
    %v1616 = vpop.f32.mrf.mxu0
    %v1617 = vadd.f32 0.0, %v1616
    %1618 = vmatmul.bf16.gmra.mxu0 %v250
    %v1619 = vpop.f32.mrf.mxu0
    %v1620 = vadd.f32 0.0, %v1619
    %v1621 = vpop.f32.mrf.mxu0
    %v1622 = vadd.f32 0.0, %v1621
    %1623 = vmatmul.bf16.gmra.mxu0 %v251
    %v1624 = vpop.f32.mrf.mxu0
    %v1625 = vadd.f32 0.0, %v1624
    %v1626 = vpop.f32.mrf.mxu0
    %v1627 = vadd.f32 0.0, %v1626
    %1628 = vmatmul.bf16.gmra.mxu0 %v252
    %v1629 = vpop.f32.mrf.mxu0
    %v1630 = vadd.f32 0.0, %v1629
    %v1631 = vpop.f32.mrf.mxu0
    %v1632 = vadd.f32 0.0, %v1631
    %1633 = vmatmul.bf16.gmra.mxu0 %v253
    %v1634 = vpop.f32.mrf.mxu0
    %v1635 = vadd.f32 0.0, %v1634
    %v1636 = vpop.f32.mrf.mxu0
    %v1637 = vadd.f32 0.0, %v1636
    %1638 = vmatmul.bf16.gmra.mxu0 %v254
    %v1639 = vpop.f32.mrf.mxu0
    %v1640 = vadd.f32 0.0, %v1639
    %v1641 = vpop.f32.mrf.mxu0
    %v1642 = vadd.f32 0.0, %v1641
    %1643 = vmatmul.bf16.gmra.mxu0 %v255
    %v1644 = vpop.f32.mrf.mxu0
    %v1645 = vadd.f32 0.0, %v1644
    %v1646 = vpop.f32.mrf.mxu0
    %v1647 = vadd.f32 0.0, %v1646
    %1648 = vmatmul.bf16.gmra.mxu0 %v256
    %v1649 = vpop.f32.mrf.mxu0
    %v1650 = vadd.f32 0.0, %v1649
    %v1651 = vpop.f32.mrf.mxu0
    %v1652 = vadd.f32 0.0, %v1651
    %1653 = vmatmul.bf16.gmra.mxu0 %v257
    %v1654 = vpop.f32.mrf.mxu0
    %v1655 = vadd.f32 0.0, %v1654
    %v1656 = vpop.f32.mrf.mxu0
    %v1657 = vadd.f32 0.0, %v1656
    %1658 = vmatmul.bf16.gmra.mxu0 %v258
    %v1659 = vpop.f32.mrf.mxu0
    %v1660 = vadd.f32 0.0, %v1659
    %v1661 = vpop.f32.mrf.mxu0
    %v1662 = vadd.f32 0.0, %v1661
    %1663 = vmatmul.bf16.gmra.mxu0 %v259
    %v1664 = vpop.f32.mrf.mxu0
    %v1665 = vpop.f32.mrf.mxu0
    %1666 = vdwg.mxu0
    %1667 = vmatpush.bf16.msra.mxu0 %v659
    %1668 = vmatpush.bf16.msra.mxu0 %v647
    %1669 = vmatpush.bf16.msra.mxu0 %v635
    %1670 = vmatpush.bf16.msra.mxu0 %v623
    %1671 = vmatpush.bf16.msra.mxu0 %v611
    %1672 = vmatpush.bf16.msra.mxu0 %v599
    %1673 = vmatpush.bf16.msra.mxu0 %v587
    %1674 = vmatpush.bf16.msra.mxu0 %v575
    %1675 = vmatmul.bf16.gmra.mxu0 %v244
    %v1676 = vpop.f32.mrf.mxu0
    %v1677 = vpop.f32.mrf.mxu0
    %1678 = vmatmul.bf16.gmra.mxu0 %v245
    %v1679 = vpop.f32.mrf.mxu0
    %v1680 = vpop.f32.mrf.mxu0
    %1681 = vmatmul.bf16.gmra.mxu0 %v246
    %v1682 = vpop.f32.mrf.mxu0
    %v1683 = vpop.f32.mrf.mxu0
    %1684 = vmatmul.bf16.gmra.mxu0 %v247
    %v1685 = vpop.f32.mrf.mxu0
    %v1686 = vpop.f32.mrf.mxu0
    %1687 = vmatmul.bf16.gmra.mxu0 %v248
    %v1688 = vpop.f32.mrf.mxu0
    %v1689 = vadd.f32 0.0, %v1688
    %v1690 = vpop.f32.mrf.mxu0
    %v1691 = vadd.f32 0.0, %v1690
    %1692 = vmatmul.bf16.gmra.mxu0 %v249
    %v1693 = vpop.f32.mrf.mxu0
    %v1694 = vadd.f32 0.0, %v1693
    %v1695 = vpop.f32.mrf.mxu0
    %v1696 = vadd.f32 0.0, %v1695
    %1697 = vmatmul.bf16.gmra.mxu0 %v250
    %v1698 = vpop.f32.mrf.mxu0
    %v1699 = vadd.f32 0.0, %v1698
    %v1700 = vpop.f32.mrf.mxu0
    %v1701 = vadd.f32 0.0, %v1700
    %1702 = vmatmul.bf16.gmra.mxu0 %v251
    %v1703 = vpop.f32.mrf.mxu0
    %v1704 = vadd.f32 0.0, %v1703
    %v1705 = vpop.f32.mrf.mxu0
    %v1706 = vadd.f32 0.0, %v1705
    %1707 = vmatmul.bf16.gmra.mxu0 %v252
    %v1708 = vpop.f32.mrf.mxu0
    %v1709 = vadd.f32 0.0, %v1708
    %v1710 = vpop.f32.mrf.mxu0
    %v1711 = vadd.f32 0.0, %v1710
    %1712 = vmatmul.bf16.gmra.mxu0 %v253
    %v1713 = vpop.f32.mrf.mxu0
    %v1714 = vadd.f32 0.0, %v1713
    %v1715 = vpop.f32.mrf.mxu0
    %v1716 = vadd.f32 0.0, %v1715
    %1717 = vmatmul.bf16.gmra.mxu0 %v254
    %v1718 = vpop.f32.mrf.mxu0
    %v1719 = vadd.f32 0.0, %v1718
    %v1720 = vpop.f32.mrf.mxu0
    %v1721 = vadd.f32 0.0, %v1720
    %1722 = vmatmul.bf16.gmra.mxu0 %v255
    %v1723 = vpop.f32.mrf.mxu0
    %v1724 = vadd.f32 0.0, %v1723
    %v1725 = vpop.f32.mrf.mxu0
    %v1726 = vadd.f32 0.0, %v1725
    %1727 = vmatmul.bf16.gmra.mxu0 %v256
    %v1728 = vpop.f32.mrf.mxu0
    %v1729 = vadd.f32 0.0, %v1728
    %v1730 = vpop.f32.mrf.mxu0
    %v1731 = vadd.f32 0.0, %v1730
    %1732 = vmatmul.bf16.gmra.mxu0 %v257
    %v1733 = vpop.f32.mrf.mxu0
    %v1734 = vadd.f32 0.0, %v1733
    %v1735 = vpop.f32.mrf.mxu0
    %v1736 = vadd.f32 0.0, %v1735
    %1737 = vmatmul.bf16.gmra.mxu0 %v258
    %v1738 = vpop.f32.mrf.mxu0
    %v1739 = vadd.f32 0.0, %v1738
    %v1740 = vpop.f32.mrf.mxu0
    %v1741 = vadd.f32 0.0, %v1740
    %1742 = vmatmul.bf16.gmra.mxu0 %v259
    %v1743 = vpop.f32.mrf.mxu0
    %v1744 = vadd.f32 0.0, %v1743
    %v1745 = vpop.f32.mrf.mxu0
    %v1746 = vadd.f32 0.0, %v1745
    %1747 = vdwg.mxu0
    %v1748 = vadd.f32 %v766, %v854
    %v1749 = vadd.f32 %v768, %v856
    %v1750 = vadd.f32 %v771, %v859
    %v1751 = vadd.f32 %v773, %v861
    %v1752 = vadd.f32 %v776, %v864
    %v1753 = vadd.f32 %v778, %v866
    %v1754 = vadd.f32 %v781, %v869
    %v1755 = vadd.f32 %v783, %v871
    %v1756 = vadd.f32 %v786, %v874
    %v1757 = vadd.f32 %v788, %v876
    %v1758 = vadd.f32 %v791, %v879
    %v1759 = vadd.f32 %v793, %v881
    %v1760 = vadd.f32 %v796, %v884
    %v1761 = vadd.f32 %v798, %v886
    %v1762 = vadd.f32 %v801, %v889
    %v1763 = vadd.f32 %v803, %v891
    %v1764 = vadd.f32 %v806, %v894
    %v1765 = vadd.f32 %v808, %v896
    %v1766 = vadd.f32 %v811, %v899
    %v1767 = vadd.f32 %v813, %v901
    %v1768 = vadd.f32 %v816, %v904
    %v1769 = vadd.f32 %v818, %v906
    %v1770 = vadd.f32 %v821, %v909
    %v1771 = vadd.f32 %v823, %v911
    %v1772 = vadd.f32 %v826, %v914
    %v1773 = vadd.f32 %v828, %v916
    %v1774 = vadd.f32 %v831, %v919
    %v1775 = vadd.f32 %v833, %v921
    %v1776 = vadd.f32 %v1748, %v942
    %v1777 = vadd.f32 %v1749, %v944
    %v1778 = vadd.f32 %v1750, %v947
    %v1779 = vadd.f32 %v1751, %v949
    %v1780 = vadd.f32 %v1752, %v952
    %v1781 = vadd.f32 %v1753, %v954
    %v1782 = vadd.f32 %v1754, %v957
    %v1783 = vadd.f32 %v1755, %v959
    %v1784 = vadd.f32 %v1756, %v962
    %v1785 = vadd.f32 %v1757, %v964
    %v1786 = vadd.f32 %v1758, %v967
    %v1787 = vadd.f32 %v1759, %v969
    %v1788 = vadd.f32 %v1760, %v972
    %v1789 = vadd.f32 %v1761, %v974
    %v1790 = vadd.f32 %v1762, %v977
    %v1791 = vadd.f32 %v1763, %v979
    %v1792 = vadd.f32 %v1764, %v982
    %v1793 = vadd.f32 %v1765, %v984
    %v1794 = vadd.f32 %v1766, %v987
    %v1795 = vadd.f32 %v1767, %v989
    %v1796 = vadd.f32 %v1768, %v992
    %v1797 = vadd.f32 %v1769, %v994
    %v1798 = vadd.f32 %v1770, %v997
    %v1799 = vadd.f32 %v1771, %v999
    %v1800 = vadd.f32 %v1772, %v1002
    %v1801 = vadd.f32 %v1773, %v1004
    %v1802 = vadd.f32 %v1774, %v1007
    %v1803 = vadd.f32 %v1775, %v1009
    %v1804 = vmax.f32 %v1776, %v1780
    %v1805 = vmax.f32 %v1778, %v1782
    %v1806 = vmax.f32 %v1804, %v1784
    %v1807 = vmax.f32 %v1805, %v1786
    %v1808 = vmax.f32 %v1806, %v1788
    %v1809 = vmax.f32 %v1807, %v1790
    %v1810 = vmax.f32 %v1808, %v1792
    %v1811 = vmax.f32 %v1809, %v1794
    %v1812 = vmax.f32 %v1810, %v1796
    %v1813 = vmax.f32 %v1811, %v1798
    %v1814 = vmax.f32 %v1812, %v1800
    %v1815 = vmax.f32 %v1813, %v1802
    %v1816 = vmax.f32 %v1814, %v1815
    %v1817 = vmax.f32 %v1777, %v1781
    %v1818 = vmax.f32 %v1779, %v1783
    %v1819 = vmax.f32 %v1817, %v1785
    %v1820 = vmax.f32 %v1818, %v1787
    %v1821 = vmax.f32 %v1819, %v1789
    %v1822 = vmax.f32 %v1820, %v1791
    %v1823 = vmax.f32 %v1821, %v1793
    %v1824 = vmax.f32 %v1822, %v1795
    %v1825 = vmax.f32 %v1823, %v1797
    %v1826 = vmax.f32 %v1824, %v1799
    %v1827 = vmax.f32 %v1825, %v1801
    %v1828 = vmax.f32 %v1826, %v1803
    %v1829 = vmax.f32 %v1827, %v1828
    %v1830 = vadd.f32 %v1021, %v1107
    %v1831 = vadd.f32 %v1023, %v1109
    %v1832 = vadd.f32 %v1026, %v1112
    %v1833 = vadd.f32 %v1028, %v1114
    %v1834 = vadd.f32 %v1031, %v1117
    %v1835 = vadd.f32 %v1033, %v1119
    %v1836 = vadd.f32 %v1036, %v1122
    %v1837 = vadd.f32 %v1038, %v1124
    %v1838 = vadd.f32 %v1041, %v1127
    %v1839 = vadd.f32 %v1043, %v1129
    %v1840 = vadd.f32 %v1046, %v1132
    %v1841 = vadd.f32 %v1048, %v1134
    %v1842 = vadd.f32 %v1051, %v1137
    %v1843 = vadd.f32 %v1053, %v1139
    %v1844 = vadd.f32 %v1056, %v1142
    %v1845 = vadd.f32 %v1058, %v1144
    %v1846 = vadd.f32 %v1061, %v1147
    %v1847 = vadd.f32 %v1063, %v1149
    %v1848 = vadd.f32 %v1066, %v1152
    %v1849 = vadd.f32 %v1068, %v1154
    %v1850 = vadd.f32 %v1071, %v1157
    %v1851 = vadd.f32 %v1073, %v1159
    %v1852 = vadd.f32 %v1076, %v1162
    %v1853 = vadd.f32 %v1078, %v1164
    %v1854 = vadd.f32 %v1081, %v1167
    %v1855 = vadd.f32 %v1083, %v1169
    %v1856 = vadd.f32 %v1830, %v1193
    %v1857 = vadd.f32 %v1831, %v1195
    %v1858 = vadd.f32 %v1832, %v1198
    %v1859 = vadd.f32 %v1833, %v1200
    %v1860 = vadd.f32 %v1834, %v1203
    %v1861 = vadd.f32 %v1835, %v1205
    %v1862 = vadd.f32 %v1836, %v1208
    %v1863 = vadd.f32 %v1837, %v1210
    %v1864 = vadd.f32 %v1838, %v1213
    %v1865 = vadd.f32 %v1839, %v1215
    %v1866 = vadd.f32 %v1840, %v1218
    %v1867 = vadd.f32 %v1841, %v1220
    %v1868 = vadd.f32 %v1842, %v1223
    %v1869 = vadd.f32 %v1843, %v1225
    %v1870 = vadd.f32 %v1844, %v1228
    %v1871 = vadd.f32 %v1845, %v1230
    %v1872 = vadd.f32 %v1846, %v1233
    %v1873 = vadd.f32 %v1847, %v1235
    %v1874 = vadd.f32 %v1848, %v1238
    %v1875 = vadd.f32 %v1849, %v1240
    %v1876 = vadd.f32 %v1850, %v1243
    %v1877 = vadd.f32 %v1851, %v1245
    %v1878 = vadd.f32 %v1852, %v1248
    %v1879 = vadd.f32 %v1853, %v1250
    %v1880 = vadd.f32 %v1854, %v1253
    %v1881 = vadd.f32 %v1855, %v1255
    %v1882 = vadd.f32 %v1856, %v1279
    %v1883 = vadd.f32 %v1857, %v1281
    %v1884 = vadd.f32 %v1858, %v1284
    %v1885 = vadd.f32 %v1859, %v1286
    %v1886 = vadd.f32 %v1860, %v1289
    %v1887 = vadd.f32 %v1861, %v1291
    %v1888 = vadd.f32 %v1862, %v1294
    %v1889 = vadd.f32 %v1863, %v1296
    %v1890 = vadd.f32 %v1864, %v1299
    %v1891 = vadd.f32 %v1865, %v1301
    %v1892 = vadd.f32 %v1866, %v1304
    %v1893 = vadd.f32 %v1867, %v1306
    %v1894 = vadd.f32 %v1868, %v1309
    %v1895 = vadd.f32 %v1869, %v1311
    %v1896 = vadd.f32 %v1870, %v1314
    %v1897 = vadd.f32 %v1871, %v1316
    %v1898 = vadd.f32 %v1872, %v1319
    %v1899 = vadd.f32 %v1873, %v1321
    %v1900 = vadd.f32 %v1874, %v1324
    %v1901 = vadd.f32 %v1875, %v1326
    %v1902 = vadd.f32 %v1876, %v1329
    %v1903 = vadd.f32 %v1877, %v1331
    %v1904 = vadd.f32 %v1878, %v1334
    %v1905 = vadd.f32 %v1879, %v1336
    %v1906 = vadd.f32 %v1880, %v1339
    %v1907 = vadd.f32 %v1881, %v1341
    %v1908 = vmax.f32 %v1882, %v1886
    %v1909 = vmax.f32 %v1884, %v1888
    %v1910 = vmax.f32 %v1908, %v1890
    %v1911 = vmax.f32 %v1909, %v1892
    %v1912 = vmax.f32 %v1910, %v1894
    %v1913 = vmax.f32 %v1911, %v1896
    %v1914 = vmax.f32 %v1912, %v1898
    %v1915 = vmax.f32 %v1913, %v1900
    %v1916 = vmax.f32 %v1914, %v1902
    %v1917 = vmax.f32 %v1915, %v1904
    %v1918 = vmax.f32 %v1916, %v1906
    %v1919 = vmax.f32 %v1918, %v1917
    %v1920 = vmax.f32 %v1883, %v1887
    %v1921 = vmax.f32 %v1885, %v1889
    %v1922 = vmax.f32 %v1920, %v1891
    %v1923 = vmax.f32 %v1921, %v1893
    %v1924 = vmax.f32 %v1922, %v1895
    %v1925 = vmax.f32 %v1923, %v1897
    %v1926 = vmax.f32 %v1924, %v1899
    %v1927 = vmax.f32 %v1925, %v1901
    %v1928 = vmax.f32 %v1926, %v1903
    %v1929 = vmax.f32 %v1927, %v1905
    %v1930 = vmax.f32 %v1928, %v1907
    %v1931 = vmax.f32 %v1930, %v1929
    %v1932 = vadd.f32 %v1353, %v1437
    %v1933 = vadd.f32 %v1355, %v1439
    %v1934 = vadd.f32 %v1358, %v1442
    %v1935 = vadd.f32 %v1360, %v1444
    %v1936 = vadd.f32 %v1363, %v1447
    %v1937 = vadd.f32 %v1365, %v1449
    %v1938 = vadd.f32 %v1368, %v1452
    %v1939 = vadd.f32 %v1370, %v1454
    %v1940 = vadd.f32 %v1373, %v1457
    %v1941 = vadd.f32 %v1375, %v1459
    %v1942 = vadd.f32 %v1378, %v1462
    %v1943 = vadd.f32 %v1380, %v1464
    %v1944 = vadd.f32 %v1383, %v1467
    %v1945 = vadd.f32 %v1385, %v1469
    %v1946 = vadd.f32 %v1388, %v1472
    %v1947 = vadd.f32 %v1390, %v1474
    %v1948 = vadd.f32 %v1393, %v1477
    %v1949 = vadd.f32 %v1395, %v1479
    %v1950 = vadd.f32 %v1398, %v1482
    %v1951 = vadd.f32 %v1400, %v1484
    %v1952 = vadd.f32 %v1403, %v1487
    %v1953 = vadd.f32 %v1405, %v1489
    %v1954 = vadd.f32 %v1408, %v1492
    %v1955 = vadd.f32 %v1410, %v1494
    %v1956 = vadd.f32 %v1932, %v1521
    %v1957 = vadd.f32 %v1933, %v1523
    %v1958 = vadd.f32 %v1934, %v1526
    %v1959 = vadd.f32 %v1935, %v1528
    %v1960 = vadd.f32 %v1936, %v1531
    %v1961 = vadd.f32 %v1937, %v1533
    %v1962 = vadd.f32 %v1938, %v1536
    %v1963 = vadd.f32 %v1939, %v1538
    %v1964 = vadd.f32 %v1940, %v1541
    %v1965 = vadd.f32 %v1941, %v1543
    %v1966 = vadd.f32 %v1942, %v1546
    %v1967 = vadd.f32 %v1943, %v1548
    %v1968 = vadd.f32 %v1944, %v1551
    %v1969 = vadd.f32 %v1945, %v1553
    %v1970 = vadd.f32 %v1946, %v1556
    %v1971 = vadd.f32 %v1947, %v1558
    %v1972 = vadd.f32 %v1948, %v1561
    %v1973 = vadd.f32 %v1949, %v1563
    %v1974 = vadd.f32 %v1950, %v1566
    %v1975 = vadd.f32 %v1951, %v1568
    %v1976 = vadd.f32 %v1952, %v1571
    %v1977 = vadd.f32 %v1953, %v1573
    %v1978 = vadd.f32 %v1954, %v1576
    %v1979 = vadd.f32 %v1955, %v1578
    %v1980 = vadd.f32 %v1956, %v1605
    %v1981 = vadd.f32 %v1957, %v1607
    %v1982 = vadd.f32 %v1958, %v1610
    %v1983 = vadd.f32 %v1959, %v1612
    %v1984 = vadd.f32 %v1960, %v1615
    %v1985 = vadd.f32 %v1961, %v1617
    %v1986 = vadd.f32 %v1962, %v1620
    %v1987 = vadd.f32 %v1963, %v1622
    %v1988 = vadd.f32 %v1964, %v1625
    %v1989 = vadd.f32 %v1965, %v1627
    %v1990 = vadd.f32 %v1966, %v1630
    %v1991 = vadd.f32 %v1967, %v1632
    %v1992 = vadd.f32 %v1968, %v1635
    %v1993 = vadd.f32 %v1969, %v1637
    %v1994 = vadd.f32 %v1970, %v1640
    %v1995 = vadd.f32 %v1971, %v1642
    %v1996 = vadd.f32 %v1972, %v1645
    %v1997 = vadd.f32 %v1973, %v1647
    %v1998 = vadd.f32 %v1974, %v1650
    %v1999 = vadd.f32 %v1975, %v1652
    %v2000 = vadd.f32 %v1976, %v1655
    %v2001 = vadd.f32 %v1977, %v1657
    %v2002 = vadd.f32 %v1978, %v1660
    %v2003 = vadd.f32 %v1979, %v1662
    %v2004 = vadd.f32 %v1980, %v1689
    %v2005 = vadd.f32 %v1981, %v1691
    %v2006 = vadd.f32 %v1982, %v1694
    %v2007 = vadd.f32 %v1983, %v1696
    %v2008 = vadd.f32 %v1984, %v1699
    %v2009 = vadd.f32 %v1985, %v1701
    %v2010 = vadd.f32 %v1986, %v1704
    %v2011 = vadd.f32 %v1987, %v1706
    %v2012 = vadd.f32 %v1988, %v1709
    %v2013 = vadd.f32 %v1989, %v1711
    %v2014 = vadd.f32 %v1990, %v1714
    %v2015 = vadd.f32 %v1991, %v1716
    %v2016 = vadd.f32 %v1992, %v1719
    %v2017 = vadd.f32 %v1993, %v1721
    %v2018 = vadd.f32 %v1994, %v1724
    %v2019 = vadd.f32 %v1995, %v1726
    %v2020 = vadd.f32 %v1996, %v1729
    %v2021 = vadd.f32 %v1997, %v1731
    %v2022 = vadd.f32 %v1998, %v1734
    %v2023 = vadd.f32 %v1999, %v1736
    %v2024 = vadd.f32 %v2000, %v1739
    %v2025 = vadd.f32 %v2001, %v1741
    %v2026 = vadd.f32 %v2002, %v1744
    %v2027 = vadd.f32 %v2003, %v1746
    %v2028 = vmax.f32 %v2004, %v2008
    %v2029 = vmax.f32 %v2006, %v2010
    %v2030 = vmax.f32 %v2028, %v2012
    %v2031 = vmax.f32 %v2029, %v2014
    %v2032 = vmax.f32 %v2030, %v2016
    %v2033 = vmax.f32 %v2031, %v2018
    %v2034 = vmax.f32 %v2032, %v2020
    %v2035 = vmax.f32 %v2033, %v2022
    %v2036 = vmax.f32 %v2034, %v2024
    %v2037 = vmax.f32 %v2035, %v2026
    %v2038 = vmax.f32 %v2036, %v2037
    %v2039 = vmax.f32 %v2005, %v2009
    %v2040 = vmax.f32 %v2007, %v2011
    %v2041 = vmax.f32 %v2039, %v2013
    %v2042 = vmax.f32 %v2040, %v2015
    %v2043 = vmax.f32 %v2041, %v2017
    %v2044 = vmax.f32 %v2042, %v2019
    %v2045 = vmax.f32 %v2043, %v2021
    %v2046 = vmax.f32 %v2044, %v2023
    %v2047 = vmax.f32 %v2045, %v2025
    %v2048 = vmax.f32 %v2046, %v2027
    %v2049 = vmax.f32 %v2047, %v2048
    %v2050 = vld [vmem:[%s2] sm:$0x7]
    %v2052 = vperm.slane %v2050, 0
    %v2053 = vperm.slane %v2050, 1
    %v2054 = vperm.slane %v2050, 2
    %v2058 = vadd.f32 %v1816, %v2052
    %v2059 = vadd.f32 %v1919, %v2053
    %v2060 = vadd.f32 %v2038, %v2054
    %v2061 = vadd.f32 %v1829, %v2052
    %v2062 = vadd.f32 %v1931, %v2053
    %v2063 = vadd.f32 %v2049, %v2054
    %v2064 = vmax.f32 %v2058, 0.0
    %v2065 = vmax.f32 %v2059, 0.0
    %v2066 = vmax.f32 %v2060, 0.0
    %v2067 = vmax.f32 %v2061, 0.0
    %v2068 = vmax.f32 %v2062, 0.0
    %v2069 = vmax.f32 %v2063, 0.0
    %v2070 = vld [vmem:[#allocation4] sm:$0xff]
    %v2071 = vld [vmem:[#allocation4 + $0x8] sm:$0xff]
    %v2072 = vld [vmem:[#allocation4 + $0x10] sm:$0xff]
    %v2073 = vld [vmem:[#allocation4 + $0x18] sm:$0xff]
    %v2074 = vld [vmem:[#allocation4 + $0x20] sm:$0xff]
    %v2075 = vld [vmem:[#allocation4 + $0x28] sm:$0xff]
    %v2076 = vld [vmem:[#allocation4 + $0x30] sm:$0xff]
    %v2077 = vld [vmem:[#allocation4 + $0x38] sm:$0xff]
    %v2078 = vld [vmem:[#allocation4 + $0x40] sm:$0xff]
    %v2079 = vld [vmem:[#allocation4 + $0x48] sm:$0xff]
    %v2080 = vld [vmem:[#allocation4 + $0x50] sm:$0xff]
    %v2081 = vld [vmem:[#allocation4 + $0x58] sm:$0xff]
    %v2082 = vld [vmem:[#allocation4 + $0x60] sm:$0xff]
    %v2083 = vld [vmem:[#allocation4 + $0x68] sm:$0xff]
    %v2084 = vld [vmem:[#allocation4 + $0x70] sm:$0xff]
    %v2085 = vld [vmem:[#allocation4 + $0x78] sm:$0xff]
    %v2086 = vld [vmem:[#allocation4 + $0x80] sm:$0xff]
    %v2087 = vld [vmem:[#allocation4 + $0x88] sm:$0xff]
    %v2088 = vld [vmem:[#allocation4 + $0x90] sm:$0xff]
    %v2089 = vld [vmem:[#allocation4 + $0x98] sm:$0xff]
    %v2090 = vld [vmem:[#allocation4 + $0xa0] sm:$0xff]
    %v2091 = vld [vmem:[#allocation4 + $0xa8] sm:$0xff]
    %v2092 = vld [vmem:[#allocation4 + $0xb0] sm:$0xff]
    %v2093 = vld [vmem:[#allocation4 + $0xb8] sm:$0xff]
    %v2094 = vld [vmem:[#allocation4 + $0xc0] sm:$0xff]
    %v2095 = vld [vmem:[#allocation4 + $0xc8] sm:$0xff]
    %v2096 = vld [vmem:[#allocation4 + $0xd0] sm:$0xff]
    %v2097 = vld [vmem:[#allocation4 + $0xd8] sm:$0xff]
    %v2098 = vld [vmem:[#allocation4 + $0xe0] sm:$0xff]
    %v2099 = vld [vmem:[#allocation4 + $0xe8] sm:$0xff]
    %v2100 = vld [vmem:[#allocation4 + $0xf0] sm:$0xff]
    %v2101 = vld [vmem:[#allocation4 + $0xf8] sm:$0xff]
    %v2102 = vld [vmem:[#allocation4 + $0x100] sm:$0xff]
    %v2103 = vld [vmem:[#allocation4 + $0x108] sm:$0xff]
    %v2104 = vld [vmem:[#allocation4 + $0x110] sm:$0xff]
    %v2105 = vld [vmem:[#allocation4 + $0x118] sm:$0xff]
    %v2106 = vld [vmem:[#allocation4 + $0x120] sm:$0xff]
    %v2107 = vld [vmem:[#allocation4 + $0x128] sm:$0xff]
    %v2108 = vld [vmem:[#allocation4 + $0x130] sm:$0xff]
    %v2109 = vld [vmem:[#allocation4 + $0x138] sm:$0xff]
    %v2110 = vld [vmem:[#allocation4 + $0x140] sm:$0xff]
    %v2111 = vld [vmem:[#allocation4 + $0x148] sm:$0xff]
    %v2112 = vld [vmem:[#allocation4 + $0x150] sm:$0xff]
    %v2113 = vld [vmem:[#allocation4 + $0x158] sm:$0xff]
    %v2114 = vld [vmem:[#allocation4 + $0x160] sm:$0xff]
    %v2115 = vld [vmem:[#allocation4 + $0x168] sm:$0xff]
    %v2116 = vld [vmem:[#allocation4 + $0x170] sm:$0xff]
    %v2117 = vld [vmem:[#allocation4 + $0x178] sm:$0xff]
    %v2118 = vld [vmem:[%s4] sm:$0x1]
    %v2120 = vperm.slane %v2118, 0
    %2122 = vmatpush.msra.mxu0 %v2085
    %2123 = vmatpush.msra.mxu0 %v2084
    %2124 = vmatpush.msra.mxu0 %v2083
    %2125 = vmatpush.msra.mxu0 %v2082
    %2126 = vmatpush.msra.mxu0 %v2081
    %2127 = vmatpush.msra.mxu0 %v2080
    %2128 = vmatpush.msra.mxu0 %v2079
    %2129 = vmatpush.msra.mxu0 %v2078
    %2130 = vmatpush.msra.mxu0 %v2077
    %2131 = vmatpush.msra.mxu0 %v2076
    %2132 = vmatpush.msra.mxu0 %v2075
    %2133 = vmatpush.msra.mxu0 %v2074
    %2134 = vmatpush.msra.mxu0 %v2073
    %2135 = vmatpush.msra.mxu0 %v2072
    %2136 = vmatpush.msra.mxu0 %v2071
    %2137 = vmatpush.msra.mxu0 %v2070
    %2138 = vmatmul.f32.gmra.mxu0 %v2064
    %v2139 = vpop.f32.mrf.mxu0
    %v2140 = vadd.f32 %v2120, %v2139
    %2141 = vmatmul.f32.gmra.mxu0 %v2067
    %v2142 = vpop.f32.mrf.mxu0
    %v2143 = vadd.f32 %v2120, %v2142
    %2144 = vdwg.mxu0
    %2145 = vmatpush.msra.mxu0 %v2101
    %2146 = vmatpush.msra.mxu0 %v2100
    %2147 = vmatpush.msra.mxu0 %v2099
    %2148 = vmatpush.msra.mxu0 %v2098
    %2149 = vmatpush.msra.mxu0 %v2097
    %2150 = vmatpush.msra.mxu0 %v2096
    %2151 = vmatpush.msra.mxu0 %v2095
    %2152 = vmatpush.msra.mxu0 %v2094
    %2153 = vmatpush.msra.mxu0 %v2093
    %2154 = vmatpush.msra.mxu0 %v2092
    %2155 = vmatpush.msra.mxu0 %v2091
    %2156 = vmatpush.msra.mxu0 %v2090
    %2157 = vmatpush.msra.mxu0 %v2089
    %2158 = vmatpush.msra.mxu0 %v2088
    %2159 = vmatpush.msra.mxu0 %v2087
    %2160 = vmatpush.msra.mxu0 %v2086
    %2161 = vmatmul.f32.gmra.mxu0 %v2065
    %v2162 = vpop.f32.mrf.mxu0
    %v2163 = vadd.f32 %v2140, %v2162
    %2164 = vmatmul.f32.gmra.mxu0 %v2068
    %v2165 = vpop.f32.mrf.mxu0
    %v2166 = vadd.f32 %v2143, %v2165
    %2167 = vdwg.mxu0
    %2168 = vmatpush.msra.mxu0 %v2117
    %2169 = vmatpush.msra.mxu0 %v2116
    %2170 = vmatpush.msra.mxu0 %v2115
    %2171 = vmatpush.msra.mxu0 %v2114
    %2172 = vmatpush.msra.mxu0 %v2113
    %2173 = vmatpush.msra.mxu0 %v2112
    %2174 = vmatpush.msra.mxu0 %v2111
    %2175 = vmatpush.msra.mxu0 %v2110
    %2176 = vmatpush.msra.mxu0 %v2109
    %2177 = vmatpush.msra.mxu0 %v2108
    %2178 = vmatpush.msra.mxu0 %v2107
    %2179 = vmatpush.msra.mxu0 %v2106
    %2180 = vmatpush.msra.mxu0 %v2105
    %2181 = vmatpush.msra.mxu0 %v2104
    %2182 = vmatpush.msra.mxu0 %v2103
    %2183 = vmatpush.msra.mxu0 %v2102
    %2184 = vmatmul.f32.gmra.mxu0 %v2066
    %v2185 = vpop.f32.mrf.mxu0
    %v2186 = vadd.f32 %v2163, %v2185
    %2187 = vmatmul.f32.gmra.mxu0 %v2069
    %v2188 = vpop.f32.mrf.mxu0
    %v2189 = vadd.f32 %v2166, %v2188
    %2190 = vdwg.mxu0
    %2191 = vst [vmem:[%s5] sm:$0xff] %v2186
    %2192 = vst [vmem:[%s5 + $0x8] sm:$0xff] %v2189
    // Predicated region
    $region30: #{textcnn_forward.1} parent=1 // pred_check
      _
    $region31: #{textcnn_forward.1} parent=1 // pred_check_branch
      %2194 = sbr.rel (0) target = $region33
    $region32: #{textcnn_forward.1} parent=1 // pred_region
      _
    $region33: #{textcnn_forward.1} parent=1 // pred_fallthru
      _
    // Predicated region
    $region34: #{textcnn_forward.1} parent=1 // pred_check
      _
    $region35: #{textcnn_forward.1} parent=1 // pred_check_branch
      %2196 = sbr.rel (0) target = $region37
    $region36: #{textcnn_forward.1} parent=1 // pred_region
      _
    $region37: #{textcnn_forward.1} parent=1 // pred_fallthru
      _
    %2197 = vsyncpa [#allocation3], 1
    %2198 = vsyncpa [#allocation5], 1

</llo_original>
